<compile_context>
chip_gen: v7x
topology: tpu7x:2x2x1
jax: 0.10.0
libtpu: 0.0.40
codegen_flags: <defaults>
</compile_context>

<pallas_src>
import functools
import math
import warnings

import jax
import jax.numpy as jnp
from jax import lax
from jax.experimental import pallas as pl
from jax.experimental.pallas import tpu as pltpu


# ------------------------------ tiling helpers -------------------------------

def _row_tile(m, target=256):
    """Sublane-dim tile: <= target, multiple of 8 dividing m, else full."""
    if m <= target:
        return m
    for t in range(target, 7, -8):
        if m % t == 0:
            return t
    return m


def _col_tile(n, target=512):
    """Lane-dim tile: <= target, multiple of 128 dividing n, else full."""
    if n <= target:
        return n
    for t in range(target, 127, -128):
        if n % t == 0:
            return t
    return n


# ------------------------------- Pallas kernels -------------------------------

def _norm_matmul_kernel(x_ref, nw_ref, w_ref, o_ref, xn_ref, *, eps):
    """o[:, j-tile] = RMSNorm(x) @ w[:, j-tile].

    Column axis is the inner 'arbitrary' grid axis; the normalized bf16
    activations are computed once per row tile (j == 0) into VMEM scratch."""
    @pl.when(pl.program_id(1) == 0)
    def _():
        x = x_ref[...].astype(jnp.float32)
        ms = jnp.mean(x * x, axis=-1, keepdims=True)
        xn_ref[...] = ((x * lax.rsqrt(ms + eps)) * nw_ref[...]).astype(jnp.bfloat16)

    o_ref[...] = jnp.dot(xn_ref[...], w_ref[...],
                         preferred_element_type=jnp.float32).astype(o_ref.dtype)


def _flash_attn_kernel(q_ref, k_ref, v_ref, mask_ref, o_ref,
                       m_ref, l_ref, acc_ref, *, n_heads, n_rep, head_dim, scale):
    """Flash-style online-softmax attention for one (batch, q-tile, kv-tile).

    q: (1, tq, H*Dh) bf16, k/v: (1, tkv, Kv*Dh) bf16.  GQA via kv head h//n_rep.
    bf16 operands straight into the MXU; f32 accumulation; softmax in f32."""
    kvi = pl.program_id(2)

    @pl.when(kvi == 0)
    def _():
        m_ref[...] = jnp.full(m_ref.shape, -1e30, jnp.float32)
        l_ref[...] = jnp.zeros_like(l_ref)
        acc_ref[...] = jnp.zeros_like(acc_ref)

    mask = mask_ref[...]  # (tq, tkv) f32
    for h in range(n_heads):
        kv = h // n_rep
        q = q_ref[0, :, h * head_dim:(h + 1) * head_dim]        # bf16 (tq, Dh)
        k = k_ref[0, :, kv * head_dim:(kv + 1) * head_dim]      # bf16 (tkv, Dh)
        v = v_ref[0, :, kv * head_dim:(kv + 1) * head_dim]      # bf16 (tkv, Dh)

        # Contract on head_dim directly (no k.T relayout).
        s = lax.dot_general(q, k, (((1,), (1,)), ((), ())),
                            preferred_element_type=jnp.float32)
        s = s * scale + mask                                     # (tq, tkv) f32

        m_prev = m_ref[:, h:h + 1]
        m_new = jnp.maximum(m_prev, jnp.max(s, axis=-1, keepdims=True))
        alpha = jnp.exp(m_prev - m_new)
        p = jnp.exp(s - m_new)
        l_ref[:, h:h + 1] = alpha * l_ref[:, h:h + 1] + jnp.sum(p, axis=-1,
                                                                keepdims=True)
        pv = jnp.dot(p.astype(v.dtype), v, preferred_element_type=jnp.float32)
        sl = slice(h * head_dim, (h + 1) * head_dim)
        acc_ref[:, sl] = alpha * acc_ref[:, sl] + pv
        m_ref[:, h:h + 1] = m_new

    @pl.when(kvi == pl.num_programs(2) - 1)
    def _():
        # NOTE: fully-masked rows never occur for causal prefill / decode, so
        # l > 0 here; exact divide keeps numerics identical to the reference.
        for h in range(n_heads):
            inv = 1.0 / l_ref[:, h:h + 1]
            sl = slice(h * head_dim, (h + 1) * head_dim)
            o_ref[0, :, sl] = (acc_ref[:, sl] * inv).astype(o_ref.dtype)


def _matmul_res_kernel(x_ref, w_ref, r_ref, o_ref, acc_ref):
    """o = r + x @ w, K-tiled with an f32 VMEM accumulator."""
    @pl.when(pl.program_id(2) == 0)
    def _():
        acc_ref[...] = jnp.zeros_like(acc_ref)

    acc_ref[...] += jnp.dot(x_ref[...], w_ref[...],
                            preferred_element_type=jnp.float32)

    @pl.when(pl.program_id(2) == pl.num_programs(2) - 1)
    def _():
        o_ref[...] = (acc_ref[...] + r_ref[...].astype(jnp.float32)
                      ).astype(o_ref.dtype)


def _norm_ffn_kernel(x_ref, nw_ref, w1_ref, w3_ref, w2_ref, o_ref,
                     xn_ref, acc_ref, *, eps):
    """o = x + w2( silu(RMSNorm(x)@w1) * (RMSNorm(x)@w3) ), tiled over hidden."""
    hi = pl.program_id(1)

    @pl.when(hi == 0)
    def _():
        x = x_ref[...].astype(jnp.float32)
        ms = jnp.mean(x * x, axis=-1, keepdims=True)
        xn_ref[...] = ((x * lax.rsqrt(ms + eps)) * nw_ref[...]).astype(jnp.bfloat16)
        acc_ref[...] = jnp.zeros_like(acc_ref)

    xn = xn_ref[...]
    h1 = jnp.dot(xn, w1_ref[...], preferred_element_type=jnp.float32)
    h3 = jnp.dot(xn, w3_ref[...], preferred_element_type=jnp.float32)
    g = (h1 * jax.nn.sigmoid(h1) * h3).astype(jnp.bfloat16)
    acc_ref[...] += jnp.dot(g, w2_ref[...], preferred_element_type=jnp.float32)

    @pl.when(hi == pl.num_programs(1) - 1)
    def _():
        o_ref[...] = (x_ref[...].astype(jnp.float32) + acc_ref[...]
                      ).astype(o_ref.dtype)


# ------------------------------ kernel wrappers -------------------------------

def fused_norm_matmul(x2d, norm_w, w, eps, out_dtype):
    m, d = x2d.shape
    n = w.shape[1]
    bm, bn = _row_tile(m), _col_tile(n)
    nw = norm_w.reshape(1, d)
    return pl.pallas_call(
        functools.partial(_norm_matmul_kernel, eps=eps),
        out_shape=jax.ShapeDtypeStruct((m, n), out_dtype),
        grid=(m // bm, n // bn),
        in_specs=[pl.BlockSpec((bm, d), lambda i, j: (i, 0)),
                  pl.BlockSpec((1, d), lambda i, j: (0, 0)),
                  pl.BlockSpec((d, bn), lambda i, j: (0, j))],
        out_specs=pl.BlockSpec((bm, bn), lambda i, j: (i, j)),
        scratch_shapes=[pltpu.VMEM((bm, d), jnp.bfloat16)],
        compiler_params=pltpu.CompilerParams(
            dimension_semantics=("parallel", "arbitrary")),
    )(x2d, nw, w)


def flash_attention(q, k, v, mask, n_heads, n_rep, head_dim):
    b, sq, qd = q.shape
    kv_len, kvd = k.shape[1], k.shape[2]
    tq = _row_tile(sq, target=256)
    tkv = _row_tile(kv_len, target=512)
    scale = 1.0 / math.sqrt(head_dim)
    return pl.pallas_call(
        functools.partial(_flash_attn_kernel, n_heads=n_heads, n_rep=n_rep,
                          head_dim=head_dim, scale=scale),
        out_shape=jax.ShapeDtypeStruct((b, sq, qd), q.dtype),
        grid=(b, sq // tq, kv_len // tkv),
        in_specs=[pl.BlockSpec((1, tq, qd), lambda bi, qi, ki: (bi, qi, 0)),
                  pl.BlockSpec((1, tkv, kvd), lambda bi, qi, ki: (bi, ki, 0)),
                  pl.BlockSpec((1, tkv, kvd), lambda bi, qi, ki: (bi, ki, 0)),
                  pl.BlockSpec((tq, tkv), lambda bi, qi, ki: (qi, ki))],
        out_specs=pl.BlockSpec((1, tq, qd), lambda bi, qi, ki: (bi, qi, 0)),
        scratch_shapes=[pltpu.VMEM((tq, n_heads), jnp.float32),
                        pltpu.VMEM((tq, n_heads), jnp.float32),
                        pltpu.VMEM((tq, qd), jnp.float32)],
        compiler_params=pltpu.CompilerParams(
            dimension_semantics=("parallel", "parallel", "arbitrary"),
            vmem_limit_bytes=32 * 1024 * 1024),
    )(q, k, v, mask)


def matmul_residual(x, w, res):
    m, k = x.shape
    _, n = w.shape
    bm, bn, bk = _row_tile(m), _col_tile(n), _col_tile(k)
    return pl.pallas_call(
        _matmul_res_kernel,
        out_shape=jax.ShapeDtypeStruct((m, n), res.dtype),
        grid=(m // bm, n // bn, k // bk),
        in_specs=[pl.BlockSpec((bm, bk), lambda i, j, kk: (i, kk)),
                  pl.BlockSpec((bk, bn), lambda i, j, kk: (kk, j)),
                  pl.BlockSpec((bm, bn), lambda i, j, kk: (i, j))],
        out_specs=pl.BlockSpec((bm, bn), lambda i, j, kk: (i, j)),
        scratch_shapes=[pltpu.VMEM((bm, bn), jnp.float32)],
        compiler_params=pltpu.CompilerParams(
            dimension_semantics=("parallel", "parallel", "arbitrary")),
    )(x, w, res)


def norm_ffn_residual(x2d, norm_w, w1, w3, w2, eps):
    m, d = x2d.shape
    hdim = w1.shape[1]
    bm, bh = _row_tile(m), _col_tile(hdim)
    nw = norm_w.reshape(1, d)
    return pl.pallas_call(
        functools.partial(_norm_ffn_kernel, eps=eps),
        out_shape=jax.ShapeDtypeStruct((m, d), x2d.dtype),
        grid=(m // bm, hdim // bh),
        in_specs=[pl.BlockSpec((bm, d), lambda i, h: (i, 0)),
                  pl.BlockSpec((1, d), lambda i, h: (0, 0)),
                  pl.BlockSpec((d, bh), lambda i, h: (0, h)),
                  pl.BlockSpec((d, bh), lambda i, h: (0, h)),
                  pl.BlockSpec((bh, d), lambda i, h: (h, 0))],
        out_specs=pl.BlockSpec((bm, d), lambda i, h: (i, 0)),
        scratch_shapes=[pltpu.VMEM((bm, d), jnp.bfloat16),
                        pltpu.VMEM((bm, d), jnp.float32)],
        compiler_params=pltpu.CompilerParams(
            dimension_semantics=("parallel", "arbitrary"),
            vmem_limit_bytes=32 * 1024 * 1024),
    )(x2d, nw, w1, w3, w2)


# ----------------------------- model glue (JAX) -------------------------------

CFG = dict(dim=32, n_layers=2, n_heads=4, n_kv_heads=2, vocab_size=64,
           multiple_of=32, ffn_dim_multiplier=None, norm_eps=1e-5,
           max_batch_size=4, max_seq_len=16)


def ffn_hidden_dim(cfg):
    hidden = 4 * cfg["dim"]
    hidden = int(2 * hidden / 3)
    if cfg["ffn_dim_multiplier"] is not None:
        hidden = int(cfg["ffn_dim_multiplier"] * hidden)
    m = cfg["multiple_of"]
    return m * ((hidden + m - 1) // m)


def precompute_freqs(dim, end, theta=10000.0):
    inv = 1.0 / (theta ** (jnp.arange(0, dim, 2)[: dim // 2].astype(jnp.float32) / dim))
    t = jnp.arange(end, dtype=jnp.float32)
    freqs = jnp.outer(t, inv)
    return jnp.cos(freqs), jnp.sin(freqs)


def apply_rotary_emb(xq, xk, cos, sin):
    """Interleaved (complex) RoPE, identical to the torch reference.
    xq: (b,s,H,Dh), xk: (b,s,Kv,Dh); cos/sin: (s, Dh//2) compact tables."""
    def rot(x):
        b, s, nh, hd = x.shape
        xf = x.astype(jnp.float32).reshape(b, s, nh, hd // 2, 2)
        x0, x1 = xf[..., 0], xf[..., 1]
        c = cos[None, :, None, :]
        sn = sin[None, :, None, :]
        o0 = x0 * c - x1 * sn
        o1 = x1 * c + x0 * sn
        return jnp.stack([o0, o1], axis=-1).reshape(b, s, nh, hd).astype(x.dtype)
    return rot(xq), rot(xk)


def init_params(key, cfg):
    dim, n_heads, n_kv = cfg["dim"], cfg["n_heads"], cfg["n_kv_heads"]
    hd = dim // n_heads
    hdim = ffn_hidden_dim(cfg)
    qkv_dim = (n_heads + 2 * n_kv) * hd

    def w(k, shape):
        return (0.02 * jax.random.normal(k, shape, dtype=jnp.float32)
                ).astype(jnp.bfloat16)

    keys = jax.random.split(key, 2 + 5 * cfg["n_layers"])
    params = {
        "tok_emb": w(keys[0], (cfg["vocab_size"], dim)),
        "w_out": w(keys[1], (dim, cfg["vocab_size"])),
        "norm_w": jnp.ones((dim,), jnp.float32),
        "layers": [],
    }
    idx = 2
    for _ in range(cfg["n_layers"]):
        params["layers"].append({
            "wqkv": w(keys[idx + 0], (dim, qkv_dim)),        # [wq | wk | wv]
            "wo":   w(keys[idx + 1], (n_heads * hd, dim)),
            "w1":   w(keys[idx + 2], (dim, hdim)),
            "w3":   w(keys[idx + 3], (dim, hdim)),
            "w2":   w(keys[idx + 4], (hdim, dim)),
            "attn_norm_w": jnp.ones((dim,), jnp.float32),
            "ffn_norm_w": jnp.ones((dim,), jnp.float32),
        })
        idx += 5
    cos, sin = precompute_freqs(hd, cfg["max_seq_len"] * 2)
    params["cos"], params["sin"] = cos, sin
    return params


def init_kv_caches(cfg):
    hd = cfg["dim"] // cfg["n_heads"]
    shape = (cfg["max_batch_size"], cfg["max_seq_len"], cfg["n_kv_heads"] * hd)
    return [(jnp.zeros(shape, jnp.bfloat16), jnp.zeros(shape, jnp.bfloat16))
            for _ in range(cfg["n_layers"])]


def transformer_block(lp, cfg, x2d, cache_k, cache_v, cos, sin, mask,
                      start_pos, bsz, seqlen):
    eps = cfg["norm_eps"]
    n_heads, n_kv = cfg["n_heads"], cfg["n_kv_heads"]
    hd = cfg["dim"] // n_heads
    n_rep = n_heads // n_kv
    q_dim, kv_dim = n_heads * hd, n_kv * hd

    # Fused RMSNorm + concatenated QKV projection (norm computed once per row tile).
    qkv = fused_norm_matmul(x2d, lp["attn_norm_w"], lp["wqkv"], eps, jnp.bfloat16)
    xq = qkv[:, :q_dim].reshape(bsz, seqlen, n_heads, hd)
    xk = qkv[:, q_dim:q_dim + kv_dim].reshape(bsz, seqlen, n_kv, hd)
    xv = qkv[:, q_dim + kv_dim:].reshape(bsz, seqlen, kv_dim)

    # RoPE on compact (seqlen, hd/2) tables (elementwise glue, XLA-fused).
    xq, xk = apply_rotary_emb(xq, xk, cos, sin)

    # KV-cache update; caches are donated to jit so this is in-place.
    cache_k = lax.dynamic_update_slice(cache_k, xk.reshape(bsz, seqlen, kv_dim),
                                       (0, start_pos, 0))
    cache_v = lax.dynamic_update_slice(cache_v, xv, (0, start_pos, 0))
    kv_len = start_pos + seqlen
    keys = cache_k[:bsz, :kv_len]
    values = cache_v[:bsz, :kv_len]

    # Flash-style attention (bf16 MXU inputs, online softmax, GQA in-kernel).
    attn = flash_attention(xq.reshape(bsz, seqlen, q_dim), keys, values, mask,
                           n_heads, n_rep, hd)

    # wo projection + residual add (K-tiled matmul, f32 accumulator).
    h2d = matmul_residual(attn.reshape(bsz * seqlen, q_dim), lp["wo"], x2d)

    # Fused RMSNorm + SwiGLU FFN (hidden-dim tiled) + residual add.
    out2d = norm_ffn_residual(h2d, lp["ffn_norm_w"], lp["w1"], lp["w3"],
                              lp["w2"], eps)
    return out2d, cache_k, cache_v


def transformer_forward(params, tokens, caches, *, start_pos, cfg):
    bsz, seqlen = tokens.shape
    dim, eps = cfg["dim"], cfg["norm_eps"]
    kv_len = start_pos + seqlen

    h2d = params["tok_emb"][tokens].reshape(bsz * seqlen, dim)
    cos = params["cos"][start_pos:start_pos + seqlen]
    sin = params["sin"][start_pos:start_pos + seqlen]
    if seqlen > 1:
        mask = jnp.triu(jnp.full((seqlen, kv_len), float("-inf"), jnp.float32),
                        k=start_pos + 1)
    else:
        mask = jnp.zeros((seqlen, kv_len), jnp.float32)

    new_caches = []
    for lp, (ck, cv) in zip(params["layers"], caches):
        h2d, ck, cv = transformer_block(lp, cfg, h2d, ck, cv, cos, sin, mask,
                                        start_pos, bsz, seqlen)
        new_caches.append((ck, cv))

    logits = fused_norm_matmul(h2d, params["norm_w"], params["w_out"], eps,
                               jnp.float32)
    return logits.reshape(bsz, seqlen, -1), new_caches


if __name__ == "__main__":
    # Donation may be unsupported on some backends; keep the output clean.
    warnings.filterwarnings("ignore", message="Some donated buffers were not usable")

    key = jax.random.PRNGKey(0)
    pkey, tkey = jax.random.split(key)
    params = init_params(pkey, CFG)
    caches = init_kv_caches(CFG)

    batch, seqlen, start_pos = 2, 8, 0
    tokens = jax.random.randint(tkey, (batch, seqlen), 0, CFG["vocab_size"],
                                dtype=jnp.int32)

    fwd = jax.jit(functools.partial(transformer_forward,
                                    start_pos=start_pos, cfg=CFG),
                  donate_argnums=(2,))          # in-place KV-cache update
    logits, caches = fwd(params, tokens, caches)
    jax.block_until_ready(logits)

    assert logits.shape == (batch, seqlen, CFG["vocab_size"])
    assert logits.dtype == jnp.float32
    assert bool(jnp.isfinite(logits).all())
    # TODO(synk): copy_kv_cache_to_cpu/gpu + to_cuda are CUDA host-transfer
    # profiling helpers with no TPU-kernel equivalent; intentionally omitted.
    print("KERNEL_OK")
</pallas_src>

<mosaic_0001>
module attributes {stable_mosaic.version = 11 : i64} {
  func.func @_norm_matmul_kernel(%arg0: i32, %arg1: i32, %arg2: memref<16x32xbf16, #tpu.memory_space<vmem>>, %arg3: memref<1x32xf32, #tpu.memory_space<vmem>>, %arg4: memref<32x64xbf16, #tpu.memory_space<vmem>>, %arg5: memref<16x64xbf16, #tpu.memory_space<vmem>>, %arg6: memref<16x32xbf16, #tpu.memory_space<vmem>>) attributes {dimension_semantics = [#tpu.dimension_semantics<parallel>, #tpu.dimension_semantics<arbitrary>], iteration_bounds = array<i64: 1, 1>, scalar_prefetch = 0 : i64, scratch_operands = 1 : i64, tpu.core_type = #tpu.core_type<tc>, window_params = [{transform_indices = @transform_0, window_bounds = array<i64: 16, 32>}, {pipeline_mode = #tpu.pipeline_mode<synchronous>, transform_indices = @transform_1, window_bounds = array<i64: 1, 32>}, {transform_indices = @transform_2, window_bounds = array<i64: 32, 64>}, {transform_indices = @transform_3, window_bounds = array<i64: 16, 64>}]} {
    %c0_i32 = arith.constant 0 : i32
    %0 = arith.cmpi eq, %arg1, %c0_i32 : i32
    %1 = arith.extui %0 : i1 to i32
    %c0_i32_0 = arith.constant 0 : i32
    %2 = arith.cmpi ne, %1, %c0_i32_0 : i32
    scf.if %2 {
      %c0_6 = arith.constant 0 : index
      %c0_7 = arith.constant 0 : index
      %8 = vector.load %arg2[%c0_6, %c0_7] : memref<16x32xbf16, #tpu.memory_space<vmem>>, vector<16x32xbf16>
      %9 = arith.extf %8 : vector<16x32xbf16> to vector<16x32xf32>
      %10 = arith.mulf %9, %9 : vector<16x32xf32>
      %cst_8 = arith.constant dense<0.000000e+00> : vector<16xf32>
      %11 = vector.multi_reduction <add>, %10, %cst_8 [1] : vector<16x32xf32> to vector<16xf32>
      %12 = vector.shape_cast %11 : vector<16xf32> to vector<16x1xf32>
      %cst_9 = arith.constant 3.200000e+01 : f32
      %13 = vector.broadcast %cst_9 : f32 to vector<16x1xf32>
      %14 = arith.divf %12, %13 : vector<16x1xf32>
      %cst_10 = arith.constant 9.99999974E-6 : f32
      %15 = vector.broadcast %cst_10 : f32 to vector<16x1xf32>
      %16 = arith.addf %14, %15 : vector<16x1xf32>
      %17 = math.rsqrt %16 : vector<16x1xf32>
      %18 = vector.broadcast %17 : vector<16x1xf32> to vector<16x32xf32>
      %19 = arith.mulf %9, %18 : vector<16x32xf32>
      %c0_11 = arith.constant 0 : index
      %c0_12 = arith.constant 0 : index
      %20 = vector.load %arg3[%c0_11, %c0_12] : memref<1x32xf32, #tpu.memory_space<vmem>>, vector<1x32xf32>
      %21 = vector.broadcast %20 : vector<1x32xf32> to vector<16x32xf32>
      %22 = arith.mulf %19, %21 : vector<16x32xf32>
      %23 = arith.truncf %22 : vector<16x32xf32> to vector<16x32xbf16>
      %c0_13 = arith.constant 0 : index
      %c0_14 = arith.constant 0 : index
      %24 = vector.load %arg6[%c0_13, %c0_14] : memref<16x32xbf16, #tpu.memory_space<vmem>>, vector<16x32xbf16>
      tpu.vector_store %arg6[%c0_13, %c0_14], %23 {strides = array<i32>} : memref<16x32xbf16, #tpu.memory_space<vmem>>, vector<16x32xbf16>,
    } else {
    }
    %c0 = arith.constant 0 : index
    %c0_1 = arith.constant 0 : index
    %3 = vector.load %arg6[%c0, %c0_1] : memref<16x32xbf16, #tpu.memory_space<vmem>>, vector<16x32xbf16>
    %c0_2 = arith.constant 0 : index
    %c0_3 = arith.constant 0 : index
    %4 = vector.load %arg4[%c0_2, %c0_3] : memref<32x64xbf16, #tpu.memory_space<vmem>>, vector<32x64xbf16>
    %cst = arith.constant dense<0.000000e+00> : vector<16x64xf32>
    %5 = tpu.matmul %3, %4, %cst {dimension_numbers = #tpu.dot_dimension_numbers<[1], [0], [0], [1], [0, 0, 1, 1], [], []>} : vector<16x32xbf16>, vector<32x64xbf16>, vector<16x64xf32> -> vector<16x64xf32>
    %6 = arith.truncf %5 : vector<16x64xf32> to vector<16x64xbf16>
    %c0_4 = arith.constant 0 : index
    %c0_5 = arith.constant 0 : index
    %7 = vector.load %arg5[%c0_4, %c0_5] : memref<16x64xbf16, #tpu.memory_space<vmem>>, vector<16x64xbf16>
    tpu.vector_store %arg5[%c0_4, %c0_5], %6 {strides = array<i32>} : memref<16x64xbf16, #tpu.memory_space<vmem>>, vector<16x64xbf16>,
    return
  }
  func.func @transform_0(%arg0: i32, %arg1: i32) -> (i32, i32) {
    %c0_i32 = arith.constant 0 : i32
    %c0_i32_0 = arith.constant 0 : i32
    return %arg0, %c0_i32 : i32, i32
  }
  func.func @transform_1(%arg0: i32, %arg1: i32) -> (i32, i32) {
    %c0_i32 = arith.constant 0 : i32
    %c0_i32_0 = arith.constant 0 : i32
    %c0_i32_1 = arith.constant 0 : i32
    return %c0_i32, %c0_i32_0 : i32, i32
  }
  func.func @transform_2(%arg0: i32, %arg1: i32) -> (i32, i32) {
    %c0_i32 = arith.constant 0 : i32
    %c0_i32_0 = arith.constant 0 : i32
    return %c0_i32, %arg1 : i32, i32
  }
  func.func @transform_3(%arg0: i32, %arg1: i32) -> (i32, i32) {
    %c0_i32 = arith.constant 0 : i32
    return %arg0, %arg1 : i32, i32
  }
}

module attributes {stable_mosaic.version = 11 : i64} {
  func.func @_matmul_res_kernel(%arg0: i32, %arg1: i32, %arg2: i32, %arg3: memref<16x32xbf16, #tpu.memory_space<vmem>>, %arg4: memref<32x32xbf16, #tpu.memory_space<vmem>>, %arg5: memref<16x32xbf16, #tpu.memory_space<vmem>>, %arg6: memref<16x32xbf16, #tpu.memory_space<vmem>>, %arg7: memref<16x32xf32, #tpu.memory_space<vmem>>) attributes {dimension_semantics = [#tpu.dimension_semantics<parallel>, #tpu.dimension_semantics<parallel>, #tpu.dimension_semantics<arbitrary>], iteration_bounds = array<i64: 1, 1, 1>, scalar_prefetch = 0 : i64, scratch_operands = 1 : i64, tpu.core_type = #tpu.core_type<tc>, window_params = [{transform_indices = @transform_0, window_bounds = array<i64: 16, 32>}, {transform_indices = @transform_1, window_bounds = array<i64: 32, 32>}, {transform_indices = @transform_2, window_bounds = array<i64: 16, 32>}, {transform_indices = @transform_3, window_bounds = array<i64: 16, 32>}]} {
    %c0_i32 = arith.constant 0 : i32
    %0 = arith.cmpi eq, %arg2, %c0_i32 : i32
    %1 = arith.extui %0 : i1 to i32
    %c0_i32_0 = arith.constant 0 : i32
    %2 = arith.cmpi ne, %1, %c0_i32_0 : i32
    scf.if %2 {
      %cst_10 = arith.constant 0.000000e+00 : f32
      %12 = vector.broadcast %cst_10 : f32 to vector<16x32xf32>
      %c0_11 = arith.constant 0 : index
      %c0_12 = arith.constant 0 : index
      %13 = vector.load %arg7[%c0_11, %c0_12] : memref<16x32xf32, #tpu.memory_space<vmem>>, vector<16x32xf32>
      tpu.vector_store %arg7[%c0_11, %c0_12], %12 {strides = array<i32>} : memref<16x32xf32, #tpu.memory_space<vmem>>, vector<16x32xf32>,
    } else {
    }
    %c0 = arith.constant 0 : index
    %c0_1 = arith.constant 0 : index
    %3 = vector.load %arg7[%c0, %c0_1] : memref<16x32xf32, #tpu.memory_space<vmem>>, vector<16x32xf32>
    %c0_2 = arith.constant 0 : index
    %c0_3 = arith.constant 0 : index
    %4 = vector.load %arg3[%c0_2, %c0_3] : memref<16x32xbf16, #tpu.memory_space<vmem>>, vector<16x32xbf16>
    %c0_4 = arith.constant 0 : index
    %c0_5 = arith.constant 0 : index
    %5 = vector.load %arg4[%c0_4, %c0_5] : memref<32x32xbf16, #tpu.memory_space<vmem>>, vector<32x32xbf16>
    %cst = arith.constant dense<0.000000e+00> : vector<16x32xf32>
    %6 = tpu.matmul %4, %5, %cst {dimension_numbers = #tpu.dot_dimension_numbers<[1], [0], [0], [1], [0, 0, 1, 1], [], []>} : vector<16x32xbf16>, vector<32x32xbf16>, vector<16x32xf32> -> vector<16x32xf32>
    %7 = arith.addf %3, %6 : vector<16x32xf32>
    %c0_6 = arith.constant 0 : index
    %c0_7 = arith.constant 0 : index
    %8 = vector.load %arg7[%c0_6, %c0_7] : memref<16x32xf32, #tpu.memory_space<vmem>>, vector<16x32xf32>
    tpu.vector_store %arg7[%c0_6, %c0_7], %7 {strides = array<i32>} : memref<16x32xf32, #tpu.memory_space<vmem>>, vector<16x32xf32>,
    %c0_i32_8 = arith.constant 0 : i32
    %9 = arith.cmpi eq, %arg2, %c0_i32_8 : i32
    %10 = arith.extui %9 : i1 to i32
    %c0_i32_9 = arith.constant 0 : i32
    %11 = arith.cmpi ne, %10, %c0_i32_9 : i32
    scf.if %11 {
      %c0_10 = arith.constant 0 : index
      %c0_11 = arith.constant 0 : index
      %12 = vector.load %arg7[%c0_10, %c0_11] : memref<16x32xf32, #tpu.memory_space<vmem>>, vector<16x32xf32>
      %c0_12 = arith.constant 0 : index
      %c0_13 = arith.constant 0 : index
      %13 = vector.load %arg5[%c0_12, %c0_13] : memref<16x32xbf16, #tpu.memory_space<vmem>>, vector<16x32xbf16>
      %14 = arith.extf %13 : vector<16x32xbf16> to vector<16x32xf32>
      %15 = arith.addf %12, %14 : vector<16x32xf32>
      %16 = arith.truncf %15 : vector<16x32xf32> to vector<16x32xbf16>
      %c0_14 = arith.constant 0 : index
      %c0_15 = arith.constant 0 : index
      %17 = vector.load %arg6[%c0_14, %c0_15] : memref<16x32xbf16, #tpu.memory_space<vmem>>, vector<16x32xbf16>
      tpu.vector_store %arg6[%c0_14, %c0_15], %16 {strides = array<i32>} : memref<16x32xbf16, #tpu.memory_space<vmem>>, vector<16x32xbf16>,
    } else {
    }
    return
  }
  func.func @transform_0(%arg0: i32, %arg1: i32, %arg2: i32) -> (i32, i32) {
    %c0_i32 = arith.constant 0 : i32
    return %arg0, %arg2 : i32, i32
  }
  func.func @transform_1(%arg0: i32, %arg1: i32, %arg2: i32) -> (i32, i32) {
    %c0_i32 = arith.constant 0 : i32
    return %arg2, %arg1 : i32, i32
  }
  func.func @transform_2(%arg0: i32, %arg1: i32, %arg2: i32) -> (i32, i32) {
    %c0_i32 = arith.constant 0 : i32
    return %arg0, %arg1 : i32, i32
  }
  func.func @transform_3(%arg0: i32, %arg1: i32, %arg2: i32) -> (i32, i32) {
    %c0_i32 = arith.constant 0 : i32
    return %arg0, %arg1 : i32, i32
  }
}

module attributes {stable_mosaic.version = 11 : i64} {
  func.func @_flash_attn_kernel(%arg0: i32, %arg1: i32, %arg2: i32, %arg3: memref<1x8x32xbf16, #tpu.memory_space<vmem>>, %arg4: memref<1x8x16xbf16, #tpu.memory_space<vmem>>, %arg5: memref<1x8x16xbf16, #tpu.memory_space<vmem>>, %arg6: memref<8x8xf32, #tpu.memory_space<vmem>>, %arg7: memref<1x8x32xbf16, #tpu.memory_space<vmem>>, %arg8: memref<8x4xf32, #tpu.memory_space<vmem>>, %arg9: memref<8x4xf32, #tpu.memory_space<vmem>>, %arg10: memref<8x32xf32, #tpu.memory_space<vmem>>) attributes {dimension_semantics = [#tpu.dimension_semantics<parallel>, #tpu.dimension_semantics<parallel>, #tpu.dimension_semantics<arbitrary>], iteration_bounds = array<i64: 2, 1, 1>, scalar_prefetch = 0 : i64, scratch_operands = 3 : i64, tpu.core_type = #tpu.core_type<tc>, window_params = [{transform_indices = @transform_0, window_bounds = array<i64: 1, 8, 32>}, {transform_indices = @transform_1, window_bounds = array<i64: 1, 8, 16>}, {transform_indices = @transform_2, window_bounds = array<i64: 1, 8, 16>}, {transform_indices = @transform_3, window_bounds = array<i64: 8, 8>}, {transform_indices = @transform_4, window_bounds = array<i64: 1, 8, 32>}]} {
    %c0_i32 = arith.constant 0 : i32
    %0 = arith.cmpi eq, %arg2, %c0_i32 : i32
    %1 = arith.extui %0 : i1 to i32
    %c0_i32_0 = arith.constant 0 : i32
    %2 = arith.cmpi ne, %1, %c0_i32_0 : i32
    scf.if %2 {
      %cst_101 = arith.constant -1.000000e+30 : f32
      %139 = vector.broadcast %cst_101 : f32 to vector<8x4xf32>
      %c0_102 = arith.constant 0 : index
      %c0_103 = arith.constant 0 : index
      %140 = vector.load %arg8[%c0_102, %c0_103] : memref<8x4xf32, #tpu.memory_space<vmem>>, vector<8x4xf32>
      tpu.vector_store %arg8[%c0_102, %c0_103], %139 {strides = array<i32>} : memref<8x4xf32, #tpu.memory_space<vmem>>, vector<8x4xf32>,
      %cst_104 = arith.constant 0.000000e+00 : f32
      %141 = vector.broadcast %cst_104 : f32 to vector<8x4xf32>
      %c0_105 = arith.constant 0 : index
      %c0_106 = arith.constant 0 : index
      %142 = vector.load %arg9[%c0_105, %c0_106] : memref<8x4xf32, #tpu.memory_space<vmem>>, vector<8x4xf32>
      tpu.vector_store %arg9[%c0_105, %c0_106], %141 {strides = array<i32>} : memref<8x4xf32, #tpu.memory_space<vmem>>, vector<8x4xf32>,
      %cst_107 = arith.constant 0.000000e+00 : f32
      %143 = vector.broadcast %cst_107 : f32 to vector<8x32xf32>
      %c0_108 = arith.constant 0 : index
      %c0_109 = arith.constant 0 : index
      %144 = vector.load %arg10[%c0_108, %c0_109] : memref<8x32xf32, #tpu.memory_space<vmem>>, vector<8x32xf32>
      tpu.vector_store %arg10[%c0_108, %c0_109], %143 {strides = array<i32>} : memref<8x32xf32, #tpu.memory_space<vmem>>, vector<8x32xf32>,
    } else {
    }
    %c0 = arith.constant 0 : index
    %c0_1 = arith.constant 0 : index
    %3 = vector.load %arg6[%c0, %c0_1] : memref<8x8xf32, #tpu.memory_space<vmem>>, vector<8x8xf32>
    %c0_2 = arith.constant 0 : index
    %c0_3 = arith.constant 0 : index
    %c0_4 = arith.constant 0 : index
    %4 = vector.load %arg3[%c0_2, %c0_3, %c0_4] : memref<1x8x32xbf16, #tpu.memory_space<vmem>>, vector<1x8x8xbf16>
    %5 = vector.shape_cast %4 : vector<1x8x8xbf16> to vector<8x8xbf16>
    %c0_5 = arith.constant 0 : index
    %c0_6 = arith.constant 0 : index
    %c0_7 = arith.constant 0 : index
    %6 = vector.load %arg4[%c0_5, %c0_6, %c0_7] : memref<1x8x16xbf16, #tpu.memory_space<vmem>>, vector<1x8x8xbf16>
    %7 = vector.shape_cast %6 : vector<1x8x8xbf16> to vector<8x8xbf16>
    %c0_8 = arith.constant 0 : index
    %c0_9 = arith.constant 0 : index
    %c0_10 = arith.constant 0 : index
    %8 = vector.load %arg5[%c0_8, %c0_9, %c0_10] : memref<1x8x16xbf16, #tpu.memory_space<vmem>>, vector<1x8x8xbf16>
    %9 = vector.shape_cast %8 : vector<1x8x8xbf16> to vector<8x8xbf16>
    %cst = arith.constant dense<0.000000e+00> : vector<8x8xf32>
    %10 = tpu.matmul %5, %7, %cst {dimension_numbers = #tpu.dot_dimension_numbers<[1], [1], [0], [0], [0, 0, 1, 0], [], []>} : vector<8x8xbf16>, vector<8x8xbf16>, vector<8x8xf32> -> vector<8x8xf32>
    %cst_11 = arith.constant 0.353553385 : f32
    %11 = vector.broadcast %cst_11 : f32 to vector<8x8xf32>
    %12 = arith.mulf %10, %11 : vector<8x8xf32>
    %13 = arith.addf %12, %3 : vector<8x8xf32>
    %c0_12 = arith.constant 0 : index
    %c0_13 = arith.constant 0 : index
    %14 = vector.load %arg8[%c0_12, %c0_13] : memref<8x4xf32, #tpu.memory_space<vmem>>, vector<8x1xf32>
    %cst_14 = arith.constant dense<0xFF800000> : vector<8xf32>
    %15 = vector.multi_reduction <maximumf>, %13, %cst_14 [1] : vector<8x8xf32> to vector<8xf32>
    %16 = vector.shape_cast %15 : vector<8xf32> to vector<8x1xf32>
    %17 = arith.maximumf %14, %16 : vector<8x1xf32>
    %18 = arith.subf %14, %17 : vector<8x1xf32>
    %19 = math.exp %18 : vector<8x1xf32>
    %20 = vector.broadcast %17 : vector<8x1xf32> to vector<8x8xf32>
    %21 = arith.subf %13, %20 : vector<8x8xf32>
    %22 = math.exp %21 : vector<8x8xf32>
    %c0_15 = arith.constant 0 : index
    %c0_16 = arith.constant 0 : index
    %23 = vector.load %arg9[%c0_15, %c0_16] : memref<8x4xf32, #tpu.memory_space<vmem>>, vector<8x1xf32>
    %24 = arith.mulf %19, %23 : vector<8x1xf32>
    %cst_17 = arith.constant dense<0.000000e+00> : vector<8xf32>
    %25 = vector.multi_reduction <add>, %22, %cst_17 [1] : vector<8x8xf32> to vector<8xf32>
    %26 = vector.shape_cast %25 : vector<8xf32> to vector<8x1xf32>
    %27 = arith.addf %24, %26 : vector<8x1xf32>
    %c0_18 = arith.constant 0 : index
    %c0_19 = arith.constant 0 : index
    %28 = vector.load %arg9[%c0_18, %c0_19] : memref<8x4xf32, #tpu.memory_space<vmem>>, vector<8x1xf32>
    tpu.vector_store %arg9[%c0_18, %c0_19], %27 {strides = array<i32>} : memref<8x4xf32, #tpu.memory_space<vmem>>, vector<8x1xf32>,
    %29 = arith.truncf %22 : vector<8x8xf32> to vector<8x8xbf16>
    %cst_20 = arith.constant dense<0.000000e+00> : vector<8x8xf32>
    %30 = tpu.matmul %29, %9, %cst_20 {dimension_numbers = #tpu.dot_dimension_numbers<[1], [0], [0], [1], [0, 0, 1, 1], [], []>} : vector<8x8xbf16>, vector<8x8xbf16>, vector<8x8xf32> -> vector<8x8xf32>
    %c0_21 = arith.constant 0 : index
    %c0_22 = arith.constant 0 : index
    %31 = vector.load %arg10[%c0_21, %c0_22] : memref<8x32xf32, #tpu.memory_space<vmem>>, vector<8x8xf32>
    %32 = vector.broadcast %19 : vector<8x1xf32> to vector<8x8xf32>
    %33 = arith.mulf %32, %31 : vector<8x8xf32>
    %34 = arith.addf %33, %30 : vector<8x8xf32>
    %c0_23 = arith.constant 0 : index
    %c0_24 = arith.constant 0 : index
    %35 = vector.load %arg10[%c0_23, %c0_24] : memref<8x32xf32, #tpu.memory_space<vmem>>, vector<8x8xf32>
    tpu.vector_store %arg10[%c0_23, %c0_24], %34 {strides = array<i32>} : memref<8x32xf32, #tpu.memory_space<vmem>>, vector<8x8xf32>,
    %c0_25 = arith.constant 0 : index
    %c0_26 = arith.constant 0 : index
    %36 = vector.load %arg8[%c0_25, %c0_26] : memref<8x4xf32, #tpu.memory_space<vmem>>, vector<8x1xf32>
    tpu.vector_store %arg8[%c0_25, %c0_26], %17 {strides = array<i32>} : memref<8x4xf32, #tpu.memory_space<vmem>>, vector<8x1xf32>,
    %c0_27 = arith.constant 0 : index
    %c0_28 = arith.constant 0 : index
    %c8 = arith.constant 8 : index
    %37 = vector.load %arg3[%c0_27, %c0_28, %c8] : memref<1x8x32xbf16, #tpu.memory_space<vmem>>, vector<1x8x8xbf16>
    %38 = vector.shape_cast %37 : vector<1x8x8xbf16> to vector<8x8xbf16>
    %c0_29 = arith.constant 0 : index
    %c0_30 = arith.constant 0 : index
    %c0_31 = arith.constant 0 : index
    %39 = vector.load %arg4[%c0_29, %c0_30, %c0_31] : memref<1x8x16xbf16, #tpu.memory_space<vmem>>, vector<1x8x8xbf16>
    %40 = vector.shape_cast %39 : vector<1x8x8xbf16> to vector<8x8xbf16>
    %c0_32 = arith.constant 0 : index
    %c0_33 = arith.constant 0 : index
    %c0_34 = arith.constant 0 : index
    %41 = vector.load %arg5[%c0_32, %c0_33, %c0_34] : memref<1x8x16xbf16, #tpu.memory_space<vmem>>, vector<1x8x8xbf16>
    %42 = vector.shape_cast %41 : vector<1x8x8xbf16> to vector<8x8xbf16>
    %cst_35 = arith.constant dense<0.000000e+00> : vector<8x8xf32>
    %43 = tpu.matmul %38, %40, %cst_35 {dimension_numbers = #tpu.dot_dimension_numbers<[1], [1], [0], [0], [0, 0, 1, 0], [], []>} : vector<8x8xbf16>, vector<8x8xbf16>, vector<8x8xf32> -> vector<8x8xf32>
    %cst_36 = arith.constant 0.353553385 : f32
    %44 = vector.broadcast %cst_36 : f32 to vector<8x8xf32>
    %45 = arith.mulf %43, %44 : vector<8x8xf32>
    %46 = arith.addf %45, %3 : vector<8x8xf32>
    %c0_37 = arith.constant 0 : index
    %c1 = arith.constant 1 : index
    %47 = vector.load %arg8[%c0_37, %c1] : memref<8x4xf32, #tpu.memory_space<vmem>>, vector<8x1xf32>
    %cst_38 = arith.constant dense<0xFF800000> : vector<8xf32>
    %48 = vector.multi_reduction <maximumf>, %46, %cst_38 [1] : vector<8x8xf32> to vector<8xf32>
    %49 = vector.shape_cast %48 : vector<8xf32> to vector<8x1xf32>
    %50 = arith.maximumf %47, %49 : vector<8x1xf32>
    %51 = arith.subf %47, %50 : vector<8x1xf32>
    %52 = math.exp %51 : vector<8x1xf32>
    %53 = vector.broadcast %50 : vector<8x1xf32> to vector<8x8xf32>
    %54 = arith.subf %46, %53 : vector<8x8xf32>
    %55 = math.exp %54 : vector<8x8xf32>
    %c0_39 = arith.constant 0 : index
    %c1_40 = arith.constant 1 : index
    %56 = vector.load %arg9[%c0_39, %c1_40] : memref<8x4xf32, #tpu.memory_space<vmem>>, vector<8x1xf32>
    %57 = arith.mulf %52, %56 : vector<8x1xf32>
    %cst_41 = arith.constant dense<0.000000e+00> : vector<8xf32>
    %58 = vector.multi_reduction <add>, %55, %cst_41 [1] : vector<8x8xf32> to vector<8xf32>
    %59 = vector.shape_cast %58 : vector<8xf32> to vector<8x1xf32>
    %60 = arith.addf %57, %59 : vector<8x1xf32>
    %c0_42 = arith.constant 0 : index
    %c1_43 = arith.constant 1 : index
    %61 = vector.load %arg9[%c0_42, %c1_43] : memref<8x4xf32, #tpu.memory_space<vmem>>, vector<8x1xf32>
    tpu.vector_store %arg9[%c0_42, %c1_43], %60 {strides = array<i32>} : memref<8x4xf32, #tpu.memory_space<vmem>>, vector<8x1xf32>,
    %62 = arith.truncf %55 : vector<8x8xf32> to vector<8x8xbf16>
    %cst_44 = arith.constant dense<0.000000e+00> : vector<8x8xf32>
    %63 = tpu.matmul %62, %42, %cst_44 {dimension_numbers = #tpu.dot_dimension_numbers<[1], [0], [0], [1], [0, 0, 1, 1], [], []>} : vector<8x8xbf16>, vector<8x8xbf16>, vector<8x8xf32> -> vector<8x8xf32>
    %c0_45 = arith.constant 0 : index
    %c8_46 = arith.constant 8 : index
    %64 = vector.load %arg10[%c0_45, %c8_46] : memref<8x32xf32, #tpu.memory_space<vmem>>, vector<8x8xf32>
    %65 = vector.broadcast %52 : vector<8x1xf32> to vector<8x8xf32>
    %66 = arith.mulf %65, %64 : vector<8x8xf32>
    %67 = arith.addf %66, %63 : vector<8x8xf32>
    %c0_47 = arith.constant 0 : index
    %c8_48 = arith.constant 8 : index
    %68 = vector.load %arg10[%c0_47, %c8_48] : memref<8x32xf32, #tpu.memory_space<vmem>>, vector<8x8xf32>
    tpu.vector_store %arg10[%c0_47, %c8_48], %67 {strides = array<i32>} : memref<8x32xf32, #tpu.memory_space<vmem>>, vector<8x8xf32>,
    %c0_49 = arith.constant 0 : index
    %c1_50 = arith.constant 1 : index
    %69 = vector.load %arg8[%c0_49, %c1_50] : memref<8x4xf32, #tpu.memory_space<vmem>>, vector<8x1xf32>
    tpu.vector_store %arg8[%c0_49, %c1_50], %50 {strides = array<i32>} : memref<8x4xf32, #tpu.memory_space<vmem>>, vector<8x1xf32>,
    %c0_51 = arith.constant 0 : index
    %c0_52 = arith.constant 0 : index
    %c16 = arith.constant 16 : index
    %70 = vector.load %arg3[%c0_51, %c0_52, %c16] : memref<1x8x32xbf16, #tpu.memory_space<vmem>>, vector<1x8x8xbf16>
    %71 = vector.shape_cast %70 : vector<1x8x8xbf16> to vector<8x8xbf16>
    %c0_53 = arith.constant 0 : index
    %c0_54 = arith.constant 0 : index
    %c8_55 = arith.constant 8 : index
    %72 = vector.load %arg4[%c0_53, %c0_54, %c8_55] : memref<1x8x16xbf16, #tpu.memory_space<vmem>>, vector<1x8x8xbf16>
    %73 = vector.shape_cast %72 : vector<1x8x8xbf16> to vector<8x8xbf16>
    %c0_56 = arith.constant 0 : index
    %c0_57 = arith.constant 0 : index
    %c8_58 = arith.constant 8 : index
    %74 = vector.load %arg5[%c0_56, %c0_57, %c8_58] : memref<1x8x16xbf16, #tpu.memory_space<vmem>>, vector<1x8x8xbf16>
    %75 = vector.shape_cast %74 : vector<1x8x8xbf16> to vector<8x8xbf16>
    %cst_59 = arith.constant dense<0.000000e+00> : vector<8x8xf32>
    %76 = tpu.matmul %71, %73, %cst_59 {dimension_numbers = #tpu.dot_dimension_numbers<[1], [1], [0], [0], [0, 0, 1, 0], [], []>} : vector<8x8xbf16>, vector<8x8xbf16>, vector<8x8xf32> -> vector<8x8xf32>
    %cst_60 = arith.constant 0.353553385 : f32
    %77 = vector.broadcast %cst_60 : f32 to vector<8x8xf32>
    %78 = arith.mulf %76, %77 : vector<8x8xf32>
    %79 = arith.addf %78, %3 : vector<8x8xf32>
    %c0_61 = arith.constant 0 : index
    %c2 = arith.constant 2 : index
    %80 = vector.load %arg8[%c0_61, %c2] : memref<8x4xf32, #tpu.memory_space<vmem>>, vector<8x1xf32>
    %cst_62 = arith.constant dense<0xFF800000> : vector<8xf32>
    %81 = vector.multi_reduction <maximumf>, %79, %cst_62 [1] : vector<8x8xf32> to vector<8xf32>
    %82 = vector.shape_cast %81 : vector<8xf32> to vector<8x1xf32>
    %83 = arith.maximumf %80, %82 : vector<8x1xf32>
    %84 = arith.subf %80, %83 : vector<8x1xf32>
    %85 = math.exp %84 : vector<8x1xf32>
    %86 = vector.broadcast %83 : vector<8x1xf32> to vector<8x8xf32>
    %87 = arith.subf %79, %86 : vector<8x8xf32>
    %88 = math.exp %87 : vector<8x8xf32>
    %c0_63 = arith.constant 0 : index
    %c2_64 = arith.constant 2 : index
    %89 = vector.load %arg9[%c0_63, %c2_64] : memref<8x4xf32, #tpu.memory_space<vmem>>, vector<8x1xf32>
    %90 = arith.mulf %85, %89 : vector<8x1xf32>
    %cst_65 = arith.constant dense<0.000000e+00> : vector<8xf32>
    %91 = vector.multi_reduction <add>, %88, %cst_65 [1] : vector<8x8xf32> to vector<8xf32>
    %92 = vector.shape_cast %91 : vector<8xf32> to vector<8x1xf32>
    %93 = arith.addf %90, %92 : vector<8x1xf32>
    %c0_66 = arith.constant 0 : index
    %c2_67 = arith.constant 2 : index
    %94 = vector.load %arg9[%c0_66, %c2_67] : memref<8x4xf32, #tpu.memory_space<vmem>>, vector<8x1xf32>
    tpu.vector_store %arg9[%c0_66, %c2_67], %93 {strides = array<i32>} : memref<8x4xf32, #tpu.memory_space<vmem>>, vector<8x1xf32>,
    %95 = arith.truncf %88 : vector<8x8xf32> to vector<8x8xbf16>
    %cst_68 = arith.constant dense<0.000000e+00> : vector<8x8xf32>
    %96 = tpu.matmul %95, %75, %cst_68 {dimension_numbers = #tpu.dot_dimension_numbers<[1], [0], [0], [1], [0, 0, 1, 1], [], []>} : vector<8x8xbf16>, vector<8x8xbf16>, vector<8x8xf32> -> vector<8x8xf32>
    %c0_69 = arith.constant 0 : index
    %c16_70 = arith.constant 16 : index
    %97 = vector.load %arg10[%c0_69, %c16_70] : memref<8x32xf32, #tpu.memory_space<vmem>>, vector<8x8xf32>
    %98 = vector.broadcast %85 : vector<8x1xf32> to vector<8x8xf32>
    %99 = arith.mulf %98, %97 : vector<8x8xf32>
    %100 = arith.addf %99, %96 : vector<8x8xf32>
    %c0_71 = arith.constant 0 : index
    %c16_72 = arith.constant 16 : index
    %101 = vector.load %arg10[%c0_71, %c16_72] : memref<8x32xf32, #tpu.memory_space<vmem>>, vector<8x8xf32>
    tpu.vector_store %arg10[%c0_71, %c16_72], %100 {strides = array<i32>} : memref<8x32xf32, #tpu.memory_space<vmem>>, vector<8x8xf32>,
    %c0_73 = arith.constant 0 : index
    %c2_74 = arith.constant 2 : index
    %102 = vector.load %arg8[%c0_73, %c2_74] : memref<8x4xf32, #tpu.memory_space<vmem>>, vector<8x1xf32>
    tpu.vector_store %arg8[%c0_73, %c2_74], %83 {strides = array<i32>} : memref<8x4xf32, #tpu.memory_space<vmem>>, vector<8x1xf32>,
    %c0_75 = arith.constant 0 : index
    %c0_76 = arith.constant 0 : index
    %c24 = arith.constant 24 : index
    %103 = vector.load %arg3[%c0_75, %c0_76, %c24] : memref<1x8x32xbf16, #tpu.memory_space<vmem>>, vector<1x8x8xbf16>
    %104 = vector.shape_cast %103 : vector<1x8x8xbf16> to vector<8x8xbf16>
    %c0_77 = arith.constant 0 : index
    %c0_78 = arith.constant 0 : index
    %c8_79 = arith.constant 8 : index
    %105 = vector.load %arg4[%c0_77, %c0_78, %c8_79] : memref<1x8x16xbf16, #tpu.memory_space<vmem>>, vector<1x8x8xbf16>
    %106 = vector.shape_cast %105 : vector<1x8x8xbf16> to vector<8x8xbf16>
    %c0_80 = arith.constant 0 : index
    %c0_81 = arith.constant 0 : index
    %c8_82 = arith.constant 8 : index
    %107 = vector.load %arg5[%c0_80, %c0_81, %c8_82] : memref<1x8x16xbf16, #tpu.memory_space<vmem>>, vector<1x8x8xbf16>
    %108 = vector.shape_cast %107 : vector<1x8x8xbf16> to vector<8x8xbf16>
    %cst_83 = arith.constant dense<0.000000e+00> : vector<8x8xf32>
    %109 = tpu.matmul %104, %106, %cst_83 {dimension_numbers = #tpu.dot_dimension_numbers<[1], [1], [0], [0], [0, 0, 1, 0], [], []>} : vector<8x8xbf16>, vector<8x8xbf16>, vector<8x8xf32> -> vector<8x8xf32>
    %cst_84 = arith.constant 0.353553385 : f32
    %110 = vector.broadcast %cst_84 : f32 to vector<8x8xf32>
    %111 = arith.mulf %109, %110 : vector<8x8xf32>
    %112 = arith.addf %111, %3 : vector<8x8xf32>
    %c0_85 = arith.constant 0 : index
    %c3 = arith.constant 3 : index
    %113 = vector.load %arg8[%c0_85, %c3] : memref<8x4xf32, #tpu.memory_space<vmem>>, vector<8x1xf32>
    %cst_86 = arith.constant dense<0xFF800000> : vector<8xf32>
    %114 = vector.multi_reduction <maximumf>, %112, %cst_86 [1] : vector<8x8xf32> to vector<8xf32>
    %115 = vector.shape_cast %114 : vector<8xf32> to vector<8x1xf32>
    %116 = arith.maximumf %113, %115 : vector<8x1xf32>
    %117 = arith.subf %113, %116 : vector<8x1xf32>
    %118 = math.exp %117 : vector<8x1xf32>
    %119 = vector.broadcast %116 : vector<8x1xf32> to vector<8x8xf32>
    %120 = arith.subf %112, %119 : vector<8x8xf32>
    %121 = math.exp %120 : vector<8x8xf32>
    %c0_87 = arith.constant 0 : index
    %c3_88 = arith.constant 3 : index
    %122 = vector.load %arg9[%c0_87, %c3_88] : memref<8x4xf32, #tpu.memory_space<vmem>>, vector<8x1xf32>
    %123 = arith.mulf %118, %122 : vector<8x1xf32>
    %cst_89 = arith.constant dense<0.000000e+00> : vector<8xf32>
    %124 = vector.multi_reduction <add>, %121, %cst_89 [1] : vector<8x8xf32> to vector<8xf32>
    %125 = vector.shape_cast %124 : vector<8xf32> to vector<8x1xf32>
    %126 = arith.addf %123, %125 : vector<8x1xf32>
    %c0_90 = arith.constant 0 : index
    %c3_91 = arith.constant 3 : index
    %127 = vector.load %arg9[%c0_90, %c3_91] : memref<8x4xf32, #tpu.memory_space<vmem>>, vector<8x1xf32>
    tpu.vector_store %arg9[%c0_90, %c3_91], %126 {strides = array<i32>} : memref<8x4xf32, #tpu.memory_space<vmem>>, vector<8x1xf32>,
    %128 = arith.truncf %121 : vector<8x8xf32> to vector<8x8xbf16>
    %cst_92 = arith.constant dense<0.000000e+00> : vector<8x8xf32>
    %129 = tpu.matmul %128, %108, %cst_92 {dimension_numbers = #tpu.dot_dimension_numbers<[1], [0], [0], [1], [0, 0, 1, 1], [], []>} : vector<8x8xbf16>, vector<8x8xbf16>, vector<8x8xf32> -> vector<8x8xf32>
    %c0_93 = arith.constant 0 : index
    %c24_94 = arith.constant 24 : index
    %130 = vector.load %arg10[%c0_93, %c24_94] : memref<8x32xf32, #tpu.memory_space<vmem>>, vector<8x8xf32>
    %131 = vector.broadcast %118 : vector<8x1xf32> to vector<8x8xf32>
    %132 = arith.mulf %131, %130 : vector<8x8xf32>
    %133 = arith.addf %132, %129 : vector<8x8xf32>
    %c0_95 = arith.constant 0 : index
    %c24_96 = arith.constant 24 : index
    %134 = vector.load %arg10[%c0_95, %c24_96] : memref<8x32xf32, #tpu.memory_space<vmem>>, vector<8x8xf32>
    tpu.vector_store %arg10[%c0_95, %c24_96], %133 {strides = array<i32>} : memref<8x32xf32, #tpu.memory_space<vmem>>, vector<8x8xf32>,
    %c0_97 = arith.constant 0 : index
    %c3_98 = arith.constant 3 : index
    %135 = vector.load %arg8[%c0_97, %c3_98] : memref<8x4xf32, #tpu.memory_space<vmem>>, vector<8x1xf32>
    tpu.vector_store %arg8[%c0_97, %c3_98], %116 {strides = array<i32>} : memref<8x4xf32, #tpu.memory_space<vmem>>, vector<8x1xf32>,
    %c0_i32_99 = arith.constant 0 : i32
    %136 = arith.cmpi eq, %arg2, %c0_i32_99 : i32
    %137 = arith.extui %136 : i1 to i32
    %c0_i32_100 = arith.constant 0 : i32
    %138 = arith.cmpi ne, %137, %c0_i32_100 : i32
    scf.if %138 {
      %c0_101 = arith.constant 0 : index
      %c0_102 = arith.constant 0 : index
      %139 = vector.load %arg9[%c0_101, %c0_102] : memref<8x4xf32, #tpu.memory_space<vmem>>, vector<8x1xf32>
      %cst_103 = arith.constant 1.000000e+00 : f32
      %140 = vector.broadcast %cst_103 : f32 to vector<8x1xf32>
      %141 = arith.divf %140, %139 : vector<8x1xf32>
      %c0_104 = arith.constant 0 : index
      %c0_105 = arith.constant 0 : index
      %142 = vector.load %arg10[%c0_104, %c0_105] : memref<8x32xf32, #tpu.memory_space<vmem>>, vector<8x8xf32>
      %143 = vector.broadcast %141 : vector<8x1xf32> to vector<8x8xf32>
      %144 = arith.mulf %142, %143 : vector<8x8xf32>
      %145 = arith.truncf %144 : vector<8x8xf32> to vector<8x8xbf16>
      %c0_106 = arith.constant 0 : index
      %c0_107 = arith.constant 0 : index
      %c0_108 = arith.constant 0 : index
      %146 = vector.load %arg7[%c0_106, %c0_107, %c0_108] : memref<1x8x32xbf16, #tpu.memory_space<vmem>>, vector<1x8x8xbf16>
      %147 = vector.shape_cast %146 : vector<1x8x8xbf16> to vector<8x8xbf16>
      %148 = vector.shape_cast %145 : vector<8x8xbf16> to vector<1x8x8xbf16>
      tpu.vector_store %arg7[%c0_106, %c0_107, %c0_108], %148 {strides = array<i32>} : memref<1x8x32xbf16, #tpu.memory_space<vmem>>, vector<1x8x8xbf16>,
      %c0_109 = arith.constant 0 : index
      %c1_110 = arith.constant 1 : index
      %149 = vector.load %arg9[%c0_109, %c1_110] : memref<8x4xf32, #tpu.memory_space<vmem>>, vector<8x1xf32>
      %cst_111 = arith.constant 1.000000e+00 : f32
      %150 = vector.broadcast %cst_111 : f32 to vector<8x1xf32>
      %151 = arith.divf %150, %149 : vector<8x1xf32>
      %c0_112 = arith.constant 0 : index
      %c8_113 = arith.constant 8 : index
      %152 = vector.load %arg10[%c0_112, %c8_113] : memref<8x32xf32, #tpu.memory_space<vmem>>, vector<8x8xf32>
      %153 = vector.broadcast %151 : vector<8x1xf32> to vector<8x8xf32>
      %154 = arith.mulf %152, %153 : vector<8x8xf32>
      %155 = arith.truncf %154 : vector<8x8xf32> to vector<8x8xbf16>
      %c0_114 = arith.constant 0 : index
      %c0_115 = arith.constant 0 : index
      %c8_116 = arith.constant 8 : index
      %156 = vector.load %arg7[%c0_114, %c0_115, %c8_116] : memref<1x8x32xbf16, #tpu.memory_space<vmem>>, vector<1x8x8xbf16>
      %157 = vector.shape_cast %156 : vector<1x8x8xbf16> to vector<8x8xbf16>
      %158 = vector.shape_cast %155 : vector<8x8xbf16> to vector<1x8x8xbf16>
      tpu.vector_store %arg7[%c0_114, %c0_115, %c8_116], %158 {strides = array<i32>} : memref<1x8x32xbf16, #tpu.memory_space<vmem>>, vector<1x8x8xbf16>,
      %c0_117 = arith.constant 0 : index
      %c2_118 = arith.constant 2 : index
      %159 = vector.load %arg9[%c0_117, %c2_118] : memref<8x4xf32, #tpu.memory_space<vmem>>, vector<8x1xf32>
      %cst_119 = arith.constant 1.000000e+00 : f32
      %160 = vector.broadcast %cst_119 : f32 to vector<8x1xf32>
      %161 = arith.divf %160, %159 : vector<8x1xf32>
      %c0_120 = arith.constant 0 : index
      %c16_121 = arith.constant 16 : index
      %162 = vector.load %arg10[%c0_120, %c16_121] : memref<8x32xf32, #tpu.memory_space<vmem>>, vector<8x8xf32>
      %163 = vector.broadcast %161 : vector<8x1xf32> to vector<8x8xf32>
      %164 = arith.mulf %162, %163 : vector<8x8xf32>
      %165 = arith.truncf %164 : vector<8x8xf32> to vector<8x8xbf16>
      %c0_122 = arith.constant 0 : index
      %c0_123 = arith.constant 0 : index
      %c16_124 = arith.constant 16 : index
      %166 = vector.load %arg7[%c0_122, %c0_123, %c16_124] : memref<1x8x32xbf16, #tpu.memory_space<vmem>>, vector<1x8x8xbf16>
      %167 = vector.shape_cast %166 : vector<1x8x8xbf16> to vector<8x8xbf16>
      %168 = vector.shape_cast %165 : vector<8x8xbf16> to vector<1x8x8xbf16>
      tpu.vector_store %arg7[%c0_122, %c0_123, %c16_124], %168 {strides = array<i32>} : memref<1x8x32xbf16, #tpu.memory_space<vmem>>, vector<1x8x8xbf16>,
      %c0_125 = arith.constant 0 : index
      %c3_126 = arith.constant 3 : index
      %169 = vector.load %arg9[%c0_125, %c3_126] : memref<8x4xf32, #tpu.memory_space<vmem>>, vector<8x1xf32>
      %cst_127 = arith.constant 1.000000e+00 : f32
      %170 = vector.broadcast %cst_127 : f32 to vector<8x1xf32>
      %171 = arith.divf %170, %169 : vector<8x1xf32>
      %c0_128 = arith.constant 0 : index
      %c24_129 = arith.constant 24 : index
      %172 = vector.load %arg10[%c0_128, %c24_129] : memref<8x32xf32, #tpu.memory_space<vmem>>, vector<8x8xf32>
      %173 = vector.broadcast %171 : vector<8x1xf32> to vector<8x8xf32>
      %174 = arith.mulf %172, %173 : vector<8x8xf32>
      %175 = arith.truncf %174 : vector<8x8xf32> to vector<8x8xbf16>
      %c0_130 = arith.constant 0 : index
      %c0_131 = arith.constant 0 : index
      %c24_132 = arith.constant 24 : index
      %176 = vector.load %arg7[%c0_130, %c0_131, %c24_132] : memref<1x8x32xbf16, #tpu.memory_space<vmem>>, vector<1x8x8xbf16>
      %177 = vector.shape_cast %176 : vector<1x8x8xbf16> to vector<8x8xbf16>
      %178 = vector.shape_cast %175 : vector<8x8xbf16> to vector<1x8x8xbf16>
      tpu.vector_store %arg7[%c0_130, %c0_131, %c24_132], %178 {strides = array<i32>} : memref<1x8x32xbf16, #tpu.memory_space<vmem>>, vector<1x8x8xbf16>,
    } else {
    }
    return
  }
  func.func @transform_0(%arg0: i32, %arg1: i32, %arg2: i32) -> (i32, i32, i32) {
    %c0_i32 = arith.constant 0 : i32
    %c0_i32_0 = arith.constant 0 : i32
    return %arg0, %arg1, %c0_i32 : i32, i32, i32
  }
  func.func @transform_1(%arg0: i32, %arg1: i32, %arg2: i32) -> (i32, i32, i32) {
    %c0_i32 = arith.constant 0 : i32
    %c0_i32_0 = arith.constant 0 : i32
    return %arg0, %arg2, %c0_i32 : i32, i32, i32
  }
  func.func @transform_2(%arg0: i32, %arg1: i32, %arg2: i32) -> (i32, i32, i32) {
    %c0_i32 = arith.constant 0 : i32
    %c0_i32_0 = arith.constant 0 : i32
    return %arg0, %arg2, %c0_i32 : i32, i32, i32
  }
  func.func @transform_3(%arg0: i32, %arg1: i32, %arg2: i32) -> (i32, i32) {
    %c0_i32 = arith.constant 0 : i32
    return %arg1, %arg2 : i32, i32
  }
  func.func @transform_4(%arg0: i32, %arg1: i32, %arg2: i32) -> (i32, i32, i32) {
    %c0_i32 = arith.constant 0 : i32
    %c0_i32_0 = arith.constant 0 : i32
    return %arg0, %arg1, %c0_i32 : i32, i32, i32
  }
}

module attributes {stable_mosaic.version = 11 : i64} {
  func.func @_norm_ffn_kernel(%arg0: i32, %arg1: i32, %arg2: memref<16x32xbf16, #tpu.memory_space<vmem>>, %arg3: memref<1x32xf32, #tpu.memory_space<vmem>>, %arg4: memref<32x96xbf16, #tpu.memory_space<vmem>>, %arg5: memref<32x96xbf16, #tpu.memory_space<vmem>>, %arg6: memref<96x32xbf16, #tpu.memory_space<vmem>>, %arg7: memref<16x32xbf16, #tpu.memory_space<vmem>>, %arg8: memref<16x32xbf16, #tpu.memory_space<vmem>>, %arg9: memref<16x32xf32, #tpu.memory_space<vmem>>) attributes {dimension_semantics = [#tpu.dimension_semantics<parallel>, #tpu.dimension_semantics<arbitrary>], iteration_bounds = array<i64: 1, 1>, scalar_prefetch = 0 : i64, scratch_operands = 2 : i64, tpu.core_type = #tpu.core_type<tc>, window_params = [{transform_indices = @transform_0, window_bounds = array<i64: 16, 32>}, {pipeline_mode = #tpu.pipeline_mode<synchronous>, transform_indices = @transform_1, window_bounds = array<i64: 1, 32>}, {transform_indices = @transform_2, window_bounds = array<i64: 32, 96>}, {transform_indices = @transform_3, window_bounds = array<i64: 32, 96>}, {transform_indices = @transform_4, window_bounds = array<i64: 96, 32>}, {transform_indices = @transform_5, window_bounds = array<i64: 16, 32>}]} {
    %c0_i32 = arith.constant 0 : i32
    %0 = arith.cmpi eq, %arg1, %c0_i32 : i32
    %1 = arith.extui %0 : i1 to i32
    %c0_i32_0 = arith.constant 0 : i32
    %2 = arith.cmpi ne, %1, %c0_i32_0 : i32
    scf.if %2 {
      %c0_17 = arith.constant 0 : index
      %c0_18 = arith.constant 0 : index
      %24 = vector.load %arg2[%c0_17, %c0_18] : memref<16x32xbf16, #tpu.memory_space<vmem>>, vector<16x32xbf16>
      %25 = arith.extf %24 : vector<16x32xbf16> to vector<16x32xf32>
      %26 = arith.mulf %25, %25 : vector<16x32xf32>
      %cst_19 = arith.constant dense<0.000000e+00> : vector<16xf32>
      %27 = vector.multi_reduction <add>, %26, %cst_19 [1] : vector<16x32xf32> to vector<16xf32>
      %28 = vector.shape_cast %27 : vector<16xf32> to vector<16x1xf32>
      %cst_20 = arith.constant 3.200000e+01 : f32
      %29 = vector.broadcast %cst_20 : f32 to vector<16x1xf32>
      %30 = arith.divf %28, %29 : vector<16x1xf32>
      %cst_21 = arith.constant 9.99999974E-6 : f32
      %31 = vector.broadcast %cst_21 : f32 to vector<16x1xf32>
      %32 = arith.addf %30, %31 : vector<16x1xf32>
      %33 = math.rsqrt %32 : vector<16x1xf32>
      %34 = vector.broadcast %33 : vector<16x1xf32> to vector<16x32xf32>
      %35 = arith.mulf %25, %34 : vector<16x32xf32>
      %c0_22 = arith.constant 0 : index
      %c0_23 = arith.constant 0 : index
      %36 = vector.load %arg3[%c0_22, %c0_23] : memref<1x32xf32, #tpu.memory_space<vmem>>, vector<1x32xf32>
      %37 = vector.broadcast %36 : vector<1x32xf32> to vector<16x32xf32>
      %38 = arith.mulf %35, %37 : vector<16x32xf32>
      %39 = arith.truncf %38 : vector<16x32xf32> to vector<16x32xbf16>
      %c0_24 = arith.constant 0 : index
      %c0_25 = arith.constant 0 : index
      %40 = vector.load %arg8[%c0_24, %c0_25] : memref<16x32xbf16, #tpu.memory_space<vmem>>, vector<16x32xbf16>
      tpu.vector_store %arg8[%c0_24, %c0_25], %39 {strides = array<i32>} : memref<16x32xbf16, #tpu.memory_space<vmem>>, vector<16x32xbf16>,
      %cst_26 = arith.constant 0.000000e+00 : f32
      %41 = vector.broadcast %cst_26 : f32 to vector<16x32xf32>
      %c0_27 = arith.constant 0 : index
      %c0_28 = arith.constant 0 : index
      %42 = vector.load %arg9[%c0_27, %c0_28] : memref<16x32xf32, #tpu.memory_space<vmem>>, vector<16x32xf32>
      tpu.vector_store %arg9[%c0_27, %c0_28], %41 {strides = array<i32>} : memref<16x32xf32, #tpu.memory_space<vmem>>, vector<16x32xf32>,
    } else {
    }
    %c0 = arith.constant 0 : index
    %c0_1 = arith.constant 0 : index
    %3 = vector.load %arg8[%c0, %c0_1] : memref<16x32xbf16, #tpu.memory_space<vmem>>, vector<16x32xbf16>
    %c0_2 = arith.constant 0 : index
    %c0_3 = arith.constant 0 : index
    %4 = vector.load %arg4[%c0_2, %c0_3] : memref<32x96xbf16, #tpu.memory_space<vmem>>, vector<32x96xbf16>
    %cst = arith.constant dense<0.000000e+00> : vector<16x96xf32>
    %5 = tpu.matmul %3, %4, %cst {dimension_numbers = #tpu.dot_dimension_numbers<[1], [0], [0], [1], [0, 0, 1, 1], [], []>} : vector<16x32xbf16>, vector<32x96xbf16>, vector<16x96xf32> -> vector<16x96xf32>
    %c0_4 = arith.constant 0 : index
    %c0_5 = arith.constant 0 : index
    %6 = vector.load %arg5[%c0_4, %c0_5] : memref<32x96xbf16, #tpu.memory_space<vmem>>, vector<32x96xbf16>
    %cst_6 = arith.constant dense<0.000000e+00> : vector<16x96xf32>
    %7 = tpu.matmul %3, %6, %cst_6 {dimension_numbers = #tpu.dot_dimension_numbers<[1], [0], [0], [1], [0, 0, 1, 1], [], []>} : vector<16x32xbf16>, vector<32x96xbf16>, vector<16x96xf32> -> vector<16x96xf32>
    %8 = arith.negf %5 : vector<16x96xf32>
    %9 = math.exp %8 : vector<16x96xf32>
    %cst_7 = arith.constant 1.000000e+00 : f32
    %10 = vector.broadcast %cst_7 : f32 to vector<16x96xf32>
    %11 = arith.addf %10, %9 : vector<16x96xf32>
    %12 = arith.divf %10, %11 : vector<16x96xf32>
    %13 = arith.mulf %5, %12 : vector<16x96xf32>
    %14 = arith.mulf %13, %7 : vector<16x96xf32>
    %15 = arith.truncf %14 : vector<16x96xf32> to vector<16x96xbf16>
    %c0_8 = arith.constant 0 : index
    %c0_9 = arith.constant 0 : index
    %16 = vector.load %arg9[%c0_8, %c0_9] : memref<16x32xf32, #tpu.memory_space<vmem>>, vector<16x32xf32>
    %c0_10 = arith.constant 0 : index
    %c0_11 = arith.constant 0 : index
    %17 = vector.load %arg6[%c0_10, %c0_11] : memref<96x32xbf16, #tpu.memory_space<vmem>>, vector<96x32xbf16>
    %cst_12 = arith.constant dense<0.000000e+00> : vector<16x32xf32>
    %18 = tpu.matmul %15, %17, %cst_12 {dimension_numbers = #tpu.dot_dimension_numbers<[1], [0], [0], [1], [0, 0, 1, 1], [], []>} : vector<16x96xbf16>, vector<96x32xbf16>, vector<16x32xf32> -> vector<16x32xf32>
    %19 = arith.addf %16, %18 : vector<16x32xf32>
    %c0_13 = arith.constant 0 : index
    %c0_14 = arith.constant 0 : index
    %20 = vector.load %arg9[%c0_13, %c0_14] : memref<16x32xf32, #tpu.memory_space<vmem>>, vector<16x32xf32>
    tpu.vector_store %arg9[%c0_13, %c0_14], %19 {strides = array<i32>} : memref<16x32xf32, #tpu.memory_space<vmem>>, vector<16x32xf32>,
    %c0_i32_15 = arith.constant 0 : i32
    %21 = arith.cmpi eq, %arg1, %c0_i32_15 : i32
    %22 = arith.extui %21 : i1 to i32
    %c0_i32_16 = arith.constant 0 : i32
    %23 = arith.cmpi ne, %22, %c0_i32_16 : i32
    scf.if %23 {
      %c0_17 = arith.constant 0 : index
      %c0_18 = arith.constant 0 : index
      %24 = vector.load %arg2[%c0_17, %c0_18] : memref<16x32xbf16, #tpu.memory_space<vmem>>, vector<16x32xbf16>
      %25 = arith.extf %24 : vector<16x32xbf16> to vector<16x32xf32>
      %c0_19 = arith.constant 0 : index
      %c0_20 = arith.constant 0 : index
      %26 = vector.load %arg9[%c0_19, %c0_20] : memref<16x32xf32, #tpu.memory_space<vmem>>, vector<16x32xf32>
      %27 = arith.addf %25, %26 : vector<16x32xf32>
      %28 = arith.truncf %27 : vector<16x32xf32> to vector<16x32xbf16>
      %c0_21 = arith.constant 0 : index
      %c0_22 = arith.constant 0 : index
      %29 = vector.load %arg7[%c0_21, %c0_22] : memref<16x32xbf16, #tpu.memory_space<vmem>>, vector<16x32xbf16>
      tpu.vector_store %arg7[%c0_21, %c0_22], %28 {strides = array<i32>} : memref<16x32xbf16, #tpu.memory_space<vmem>>, vector<16x32xbf16>,
    } else {
    }
    return
  }
  func.func @transform_0(%arg0: i32, %arg1: i32) -> (i32, i32) {
    %c0_i32 = arith.constant 0 : i32
    %c0_i32_0 = arith.constant 0 : i32
    return %arg0, %c0_i32 : i32, i32
  }
  func.func @transform_1(%arg0: i32, %arg1: i32) -> (i32, i32) {
    %c0_i32 = arith.constant 0 : i32
    %c0_i32_0 = arith.constant 0 : i32
    %c0_i32_1 = arith.constant 0 : i32
    return %c0_i32, %c0_i32_0 : i32, i32
  }
  func.func @transform_2(%arg0: i32, %arg1: i32) -> (i32, i32) {
    %c0_i32 = arith.constant 0 : i32
    %c0_i32_0 = arith.constant 0 : i32
    return %c0_i32, %arg1 : i32, i32
  }
  func.func @transform_3(%arg0: i32, %arg1: i32) -> (i32, i32) {
    %c0_i32 = arith.constant 0 : i32
    %c0_i32_0 = arith.constant 0 : i32
    return %c0_i32, %arg1 : i32, i32
  }
  func.func @transform_4(%arg0: i32, %arg1: i32) -> (i32, i32) {
    %c0_i32 = arith.constant 0 : i32
    %c0_i32_0 = arith.constant 0 : i32
    return %arg1, %c0_i32 : i32, i32
  }
  func.func @transform_5(%arg0: i32, %arg1: i32) -> (i32, i32) {
    %c0_i32 = arith.constant 0 : i32
    %c0_i32_0 = arith.constant 0 : i32
    return %arg0, %c0_i32 : i32, i32
  }
}

module attributes {stable_mosaic.version = 11 : i64} {
  func.func @_norm_matmul_kernel(%arg0: i32, %arg1: i32, %arg2: memref<16x32xbf16, #tpu.memory_space<vmem>>, %arg3: memref<1x32xf32, #tpu.memory_space<vmem>>, %arg4: memref<32x64xbf16, #tpu.memory_space<vmem>>, %arg5: memref<16x64xf32, #tpu.memory_space<vmem>>, %arg6: memref<16x32xbf16, #tpu.memory_space<vmem>>) attributes {dimension_semantics = [#tpu.dimension_semantics<parallel>, #tpu.dimension_semantics<arbitrary>], iteration_bounds = array<i64: 1, 1>, scalar_prefetch = 0 : i64, scratch_operands = 1 : i64, tpu.core_type = #tpu.core_type<tc>, window_params = [{transform_indices = @transform_0, window_bounds = array<i64: 16, 32>}, {pipeline_mode = #tpu.pipeline_mode<synchronous>, transform_indices = @transform_1, window_bounds = array<i64: 1, 32>}, {transform_indices = @transform_2, window_bounds = array<i64: 32, 64>}, {transform_indices = @transform_3, window_bounds = array<i64: 16, 64>}]} {
    %c0_i32 = arith.constant 0 : i32
    %0 = arith.cmpi eq, %arg1, %c0_i32 : i32
    %1 = arith.extui %0 : i1 to i32
    %c0_i32_0 = arith.constant 0 : i32
    %2 = arith.cmpi ne, %1, %c0_i32_0 : i32
    scf.if %2 {
      %c0_6 = arith.constant 0 : index
      %c0_7 = arith.constant 0 : index
      %7 = vector.load %arg2[%c0_6, %c0_7] : memref<16x32xbf16, #tpu.memory_space<vmem>>, vector<16x32xbf16>
      %8 = arith.extf %7 : vector<16x32xbf16> to vector<16x32xf32>
      %9 = arith.mulf %8, %8 : vector<16x32xf32>
      %cst_8 = arith.constant dense<0.000000e+00> : vector<16xf32>
      %10 = vector.multi_reduction <add>, %9, %cst_8 [1] : vector<16x32xf32> to vector<16xf32>
      %11 = vector.shape_cast %10 : vector<16xf32> to vector<16x1xf32>
      %cst_9 = arith.constant 3.200000e+01 : f32
      %12 = vector.broadcast %cst_9 : f32 to vector<16x1xf32>
      %13 = arith.divf %11, %12 : vector<16x1xf32>
      %cst_10 = arith.constant 9.99999974E-6 : f32
      %14 = vector.broadcast %cst_10 : f32 to vector<16x1xf32>
      %15 = arith.addf %13, %14 : vector<16x1xf32>
      %16 = math.rsqrt %15 : vector<16x1xf32>
      %17 = vector.broadcast %16 : vector<16x1xf32> to vector<16x32xf32>
      %18 = arith.mulf %8, %17 : vector<16x32xf32>
      %c0_11 = arith.constant 0 : index
      %c0_12 = arith.constant 0 : index
      %19 = vector.load %arg3[%c0_11, %c0_12] : memref<1x32xf32, #tpu.memory_space<vmem>>, vector<1x32xf32>
      %20 = vector.broadcast %19 : vector<1x32xf32> to vector<16x32xf32>
      %21 = arith.mulf %18, %20 : vector<16x32xf32>
      %22 = arith.truncf %21 : vector<16x32xf32> to vector<16x32xbf16>
      %c0_13 = arith.constant 0 : index
      %c0_14 = arith.constant 0 : index
      %23 = vector.load %arg6[%c0_13, %c0_14] : memref<16x32xbf16, #tpu.memory_space<vmem>>, vector<16x32xbf16>
      tpu.vector_store %arg6[%c0_13, %c0_14], %22 {strides = array<i32>} : memref<16x32xbf16, #tpu.memory_space<vmem>>, vector<16x32xbf16>,
    } else {
    }
    %c0 = arith.constant 0 : index
    %c0_1 = arith.constant 0 : index
    %3 = vector.load %arg6[%c0, %c0_1] : memref<16x32xbf16, #tpu.memory_space<vmem>>, vector<16x32xbf16>
    %c0_2 = arith.constant 0 : index
    %c0_3 = arith.constant 0 : index
    %4 = vector.load %arg4[%c0_2, %c0_3] : memref<32x64xbf16, #tpu.memory_space<vmem>>, vector<32x64xbf16>
    %cst = arith.constant dense<0.000000e+00> : vector<16x64xf32>
    %5 = tpu.matmul %3, %4, %cst {dimension_numbers = #tpu.dot_dimension_numbers<[1], [0], [0], [1], [0, 0, 1, 1], [], []>} : vector<16x32xbf16>, vector<32x64xbf16>, vector<16x64xf32> -> vector<16x64xf32>
    %c0_4 = arith.constant 0 : index
    %c0_5 = arith.constant 0 : index
    %6 = vector.load %arg5[%c0_4, %c0_5] : memref<16x64xf32, #tpu.memory_space<vmem>>, vector<16x64xf32>
    tpu.vector_store %arg5[%c0_4, %c0_5], %5 {strides = array<i32>} : memref<16x64xf32, #tpu.memory_space<vmem>>, vector<16x64xf32>,
    return
  }
  func.func @transform_0(%arg0: i32, %arg1: i32) -> (i32, i32) {
    %c0_i32 = arith.constant 0 : i32
    %c0_i32_0 = arith.constant 0 : i32
    return %arg0, %c0_i32 : i32, i32
  }
  func.func @transform_1(%arg0: i32, %arg1: i32) -> (i32, i32) {
    %c0_i32 = arith.constant 0 : i32
    %c0_i32_0 = arith.constant 0 : i32
    %c0_i32_1 = arith.constant 0 : i32
    return %c0_i32, %c0_i32_0 : i32, i32
  }
  func.func @transform_2(%arg0: i32, %arg1: i32) -> (i32, i32) {
    %c0_i32 = arith.constant 0 : i32
    %c0_i32_0 = arith.constant 0 : i32
    return %c0_i32, %arg1 : i32, i32
  }
  func.func @transform_3(%arg0: i32, %arg1: i32) -> (i32, i32) {
    %c0_i32 = arith.constant 0 : i32
    return %arg0, %arg1 : i32, i32
  }
}

</mosaic_0001>

<llo_original>
// kernel: transformer_forward.9
$region0: #{transformer_forward.9}
  #allocation0 [shape = 'u32[]', space=smem, size = 0x4, offset = 0x4, fixed_abs, tag = 'smem constant byte address 0x4 - core index']
  #allocation1 [shape = 'u32[144,128]{1,0:T(1,128)}', space=vmem, size = 0x12000, scoped, tag = 'internal scratch']
  #allocation2 [shape = 'bf16[16,32]{1,0:T(16,128)(2,1)}', space=vmem, size = 0x1000, scoped, tag = 'scratch operand']
  %s0 = inlined_call_operand.vmem [shape: bf16[16,32], index: 0, kind: input, shape index: {}]
  %s1 = inlined_call_operand.vmem [shape: f32[1,32], index: 1, kind: input, shape index: {}]
  %s2 = inlined_call_operand.vmem [shape: bf16[32,64], index: 2, kind: input, shape index: {}]
  %s3 = inlined_call_operand.vmem [shape: bf16[16,64], index: 3, kind: output, shape index: {}]
  %s4 = sld [smem:[#allocation0]]
  $region26: #{transformer_forward.9} parent=0
    _
  %s6 = ssub.s32 1, %s4
  %s7 = scalar_select 0, %s6, %s4
  // Predicated region
  $region2: #{transformer_forward.9} parent=0 // pred_check
    _
  $region3: #{transformer_forward.9} parent=0 // pred_check_branch
    %9 = sbr.rel (0) target = $region5
  $region4: #{transformer_forward.9} parent=0 // pred_region
    _
  $region5: #{transformer_forward.9} parent=0 // pred_fallthru
    _
  // Predicated region
  $region6: #{transformer_forward.9} parent=0 // pred_check
    _
  $region7: #{transformer_forward.9} parent=0 // pred_check_branch
    %11 = sbr.rel (0) target = $region9
  $region8: #{transformer_forward.9} parent=0 // pred_region
    _
  $region9: #{transformer_forward.9} parent=0 // pred_fallthru
    _
  // Predicated region
  $region10: #{transformer_forward.9} parent=0 // pred_check
    _
  $region11: #{transformer_forward.9} parent=0 // pred_check_branch
    %13 = sbr.rel (0) target = $region13
  $region12: #{transformer_forward.9} parent=0 // pred_region
    _
  $region13: #{transformer_forward.9} parent=0 // pred_fallthru
    _
  %p15 = scmp.eq.s32.totalorder 0, 0
  // Predicated region
  $region14: #{transformer_forward.9} parent=0 // pred_check
    %p16 = pneg %p15
  $region15: #{transformer_forward.9} parent=0 // pred_check_branch
    %18 = sbr.rel (%p16) target = $region17
  $region16: #{transformer_forward.9} parent=0 // pred_region
    %v19 = vld [vmem:[%s0] sm:$0xf]
    %v20 = vld [vmem:[%s0 + $0x4] sm:$0xf]
    %v21 = vunpack.c.l.bf16 %v19
    %v22 = vunpack.c.l.bf16 %v20
    %v23 = vmul.f32 %v21, %v21
    %v24 = vmul.f32 %v22, %v22
    %vm25 = vcmask 261120
    %v26 = vsel %vm25, %v23, 0.0
    %27 = vadd.xlane.f32.xlu0 %v26
    %v28 = vpop.xlane.xlu0 %27
    %v29 = vsel %vm25, %v24, 0.0
    %30 = vadd.xlane.f32.xlu0 %v29
    %v31 = vpop.xlane.xlu0 %30
    %v32 = vrcp.pop 32.0
    %v33 = vmul.f32 %v28, %v32
    %v34 = vmul.f32 %v31, %v32
    %v35 = vadd.f32 %v33, 1e-05
    %v36 = vadd.f32 %v34, 1e-05
    %v37 = vrsqrt.pop %v35
    %v38 = vrsqrt.pop %v36
    %v39 = vmul.f32 %v21, %v37
    %v40 = vmul.f32 %v22, %v38
    %v41 = vld [vmem:[%s1] sm:$0x1]
    %v43 = vlaneseq
    %v44 = vshrl.u32 %v43, 7
    %v45 = vsub.s32 0, %v44
    %v46 = vrot.slane %v41, %v45
    %v48 = vmul.f32 %v39, %v46
    %v49 = vmul.f32 %v40, %v46
    %v50 = vpack.c.bf16 %v49, %v48
    %51 = vst.msk [vmem:[#allocation2] sm:$0xff] %vm25, %v50
  $region17: #{transformer_forward.9} parent=0 // pred_fallthru
    _
  %v52 = vld [vmem:[#allocation2] sm:$0xff]
  %v53 = vld [vmem:[%s2] sm:$0xf]
  %v54 = vld [vmem:[%s2 + $0x4] sm:$0xf]
  %v55 = vld [vmem:[%s2 + $0x8] sm:$0xf]
  %v56 = vld [vmem:[%s2 + $0xc] sm:$0xf]
  %v61 = vunpack.c.l.b16 %v53
  %v62 = vunpack.c.l.b16 %v54
  %v63 = vunpack.c.l.b16 %v55
  %v64 = vunpack.c.l.b16 %v56
  %v65 = vpack.c.b16 %v62, %v61
  %v66 = vpack.c.b16 %v64, %v63
  %vm69 = vcmask 261120
  %v71 = vsel %vm69, %v52, 0
  %73 = vmatprep.subr.bf16.mxu0 0
  %74 = vmatpush1.bf16.msra.mxu0 %v65
  %75 = vmatprep.subr.bf16.mxu0 0
  %76 = vmatpush1.bf16.msra.mxu0 %v66
  %77 = vmatprep.subr.bf16.mxu0 0
  %78 = vmatpush1.bf16.msra.mxu0 0
  %79 = vmatprep.subr.bf16.mxu0 0
  %80 = vmatpush1.bf16.msra.mxu0 0
  %81 = vmatprep.subr.bf16.mxu0 0
  %82 = vmatpush1.bf16.msra.mxu0 0
  %83 = vmatprep.subr.bf16.mxu0 0
  %84 = vmatpush1.bf16.msra.mxu0 0
  %85 = vmatprep.subr.bf16.mxu0 0
  %86 = vmatpush1.bf16.msra.mxu0 0
  %87 = vmatprep.subr.bf16.mxu0 0
  %88 = vmatpush1.bf16.msra.mxu0 0
  %89 = vmatprep.subr.bf16.mxu0 0
  %90 = vmatpush1.bf16.msra.mxu0 0
  %91 = vmatprep.subr.bf16.mxu0 0
  %92 = vmatpush1.bf16.msra.mxu0 0
  %93 = vmatprep.subr.bf16.mxu0 0
  %94 = vmatpush1.bf16.msra.mxu0 0
  %95 = vmatprep.subr.bf16.mxu0 0
  %96 = vmatpush1.bf16.msra.mxu0 0
  %97 = vmatprep.subr.bf16.mxu0 0
  %98 = vmatpush1.bf16.msra.mxu0 0
  %99 = vmatprep.subr.bf16.mxu0 0
  %100 = vmatpush1.bf16.msra.mxu0 0
  %101 = vmatprep.subr.bf16.mxu0 0
  %102 = vmatpush1.bf16.msra.mxu0 0
  %103 = vmatprep.subr.bf16.mxu0 0
  %104 = vmatpush1.bf16.msra.mxu0 0
  %105 = vmatprep.mubr.bf16.mxu0 0
  %106 = vmatmul.mubr.bf16.gmra.mrb[0].mxu0 %v71
  %v107 = vpop.f32.mrb[0].mxu0
  %v108 = vadd.f32 0.0, %v107
  %v109 = vpop.f32.mrb[0].mxu0
  %v110 = vpop.f32.mrb[0].mxu0
  %v111 = vadd.f32 0.0, %v110
  %v112 = vpop.f32.mrb[0].mxu0
  %113 = vdwg.mxu0
  %v114 = vpack.c.bf16 %v111, %v108
  %v116 = vunpack.c.l.b16 %v114
  %v117 = vunpack.c.h.b16 %v114
  %v118 = vpack.c.b16 %v116, %v116
  %v119 = vpack.c.b16 %v117, %v117
  %vm122 = vcmask 519168
  %123 = vst.msk [vmem:[%s3] sm:$0xf] %vm122, %v118
  %124 = vst.msk [vmem:[%s3 + $0x4] sm:$0xf] %vm122, %v119
  // Predicated region
  $region18: #{transformer_forward.9} parent=0 // pred_check
    _
  $region19: #{transformer_forward.9} parent=0 // pred_check_branch
    %126 = sbr.rel (0) target = $region21
  $region20: #{transformer_forward.9} parent=0 // pred_region
    _
  $region21: #{transformer_forward.9} parent=0 // pred_fallthru
    _
  // Predicated region
  $region22: #{transformer_forward.9} parent=0 // pred_check
    _
  $region23: #{transformer_forward.9} parent=0 // pred_check_branch
    %128 = sbr.rel (0) target = $region25
  $region24: #{transformer_forward.9} parent=0 // pred_region
    _
  $region25: #{transformer_forward.9} parent=0 // pred_fallthru
    _

// kernel: transformer_forward.11
$region0: #{transformer_forward.11}
  #allocation0 [shape = 'u32[]', space=smem, size = 0x4, offset = 0x4, fixed_abs, tag = 'smem constant byte address 0x4 - core index']
  #allocation1 [shape = 'u32[144,128]{1,0:T(1,128)}', space=vmem, size = 0x12000, scoped, tag = 'internal scratch']
  #allocation2 [shape = 'f32[16,32]{1,0:T(8,128)}', space=vmem, size = 0x2000, scoped, tag = 'scratch operand']
  %s0 = inlined_call_operand.vmem [shape: bf16[16,32], index: 0, kind: input, shape index: {}]
  %s1 = inlined_call_operand.vmem [shape: bf16[32,32], index: 1, kind: input, shape index: {}]
  %s2 = inlined_call_operand.vmem [shape: bf16[16,32], index: 2, kind: input, shape index: {}]
  %s3 = inlined_call_operand.vmem [shape: bf16[16,32], index: 3, kind: output, shape index: {}]
  %s4 = sld [smem:[#allocation0]]
  $region30: #{transformer_forward.11} parent=0
    _
  %s6 = ssub.s32 1, %s4
  %s7 = scalar_select 0, %s6, %s4
  // Predicated region
  $region2: #{transformer_forward.11} parent=0 // pred_check
    _
  $region3: #{transformer_forward.11} parent=0 // pred_check_branch
    %9 = sbr.rel (0) target = $region5
  $region4: #{transformer_forward.11} parent=0 // pred_region
    _
  $region5: #{transformer_forward.11} parent=0 // pred_fallthru
    _
  // Predicated region
  $region6: #{transformer_forward.11} parent=0 // pred_check
    _
  $region7: #{transformer_forward.11} parent=0 // pred_check_branch
    %11 = sbr.rel (0) target = $region9
  $region8: #{transformer_forward.11} parent=0 // pred_region
    _
  $region9: #{transformer_forward.11} parent=0 // pred_fallthru
    _
  // Predicated region
  $region10: #{transformer_forward.11} parent=0 // pred_check
    _
  $region11: #{transformer_forward.11} parent=0 // pred_check_branch
    %13 = sbr.rel (0) target = $region13
  $region12: #{transformer_forward.11} parent=0 // pred_region
    _
  $region13: #{transformer_forward.11} parent=0 // pred_fallthru
    _
  %p15 = scmp.eq.s32.totalorder 0, 0
  // Predicated region
  $region14: #{transformer_forward.11} parent=0 // pred_check
    %p16 = pneg %p15
  $region15: #{transformer_forward.11} parent=0 // pred_check_branch
    %18 = sbr.rel (%p16) target = $region17
  $region16: #{transformer_forward.11} parent=0 // pred_region
    %vm19 = vcmask 261120
    %20 = vst.msk [vmem:[#allocation2] sm:$0xff] %vm19, 0.0
    %21 = vst.msk [vmem:[#allocation2 + $0x8] sm:$0xff] %vm19, 0.0
  $region17: #{transformer_forward.11} parent=0 // pred_fallthru
    _
  %v22 = vld [vmem:[#allocation2] sm:$0xff]
  %v23 = vld [vmem:[#allocation2 + $0x8] sm:$0xff]
  %v24 = vld [vmem:[%s0] sm:$0xf]
  %v25 = vld [vmem:[%s0 + $0x4] sm:$0xf]
  %v26 = vld [vmem:[%s1] sm:$0xf]
  %v27 = vld [vmem:[%s1 + $0x4] sm:$0xf]
  %v28 = vld [vmem:[%s1 + $0x8] sm:$0xf]
  %v29 = vld [vmem:[%s1 + $0xc] sm:$0xf]
  %v32 = vunpack.c.l.b16 %v24
  %v33 = vunpack.c.l.b16 %v25
  %v34 = vpack.c.b16 %v33, %v32
  %v39 = vunpack.c.l.b16 %v26
  %v40 = vunpack.c.l.b16 %v27
  %v41 = vunpack.c.l.b16 %v28
  %v42 = vunpack.c.l.b16 %v29
  %v43 = vpack.c.b16 %v40, %v39
  %v44 = vpack.c.b16 %v42, %v41
  %vm47 = vcmask 261120
  %v49 = vsel %vm47, %v34, 0
  %51 = vmatprep.subr.bf16.mxu0 0
  %52 = vmatpush1.bf16.msra.mxu0 %v43
  %53 = vmatprep.subr.bf16.mxu0 0
  %54 = vmatpush1.bf16.msra.mxu0 %v44
  %55 = vmatprep.subr.bf16.mxu0 0
  %56 = vmatpush1.bf16.msra.mxu0 0
  %57 = vmatprep.subr.bf16.mxu0 0
  %58 = vmatpush1.bf16.msra.mxu0 0
  %59 = vmatprep.subr.bf16.mxu0 0
  %60 = vmatpush1.bf16.msra.mxu0 0
  %61 = vmatprep.subr.bf16.mxu0 0
  %62 = vmatpush1.bf16.msra.mxu0 0
  %63 = vmatprep.subr.bf16.mxu0 0
  %64 = vmatpush1.bf16.msra.mxu0 0
  %65 = vmatprep.subr.bf16.mxu0 0
  %66 = vmatpush1.bf16.msra.mxu0 0
  %67 = vmatprep.subr.bf16.mxu0 0
  %68 = vmatpush1.bf16.msra.mxu0 0
  %69 = vmatprep.subr.bf16.mxu0 0
  %70 = vmatpush1.bf16.msra.mxu0 0
  %71 = vmatprep.subr.bf16.mxu0 0
  %72 = vmatpush1.bf16.msra.mxu0 0
  %73 = vmatprep.subr.bf16.mxu0 0
  %74 = vmatpush1.bf16.msra.mxu0 0
  %75 = vmatprep.subr.bf16.mxu0 0
  %76 = vmatpush1.bf16.msra.mxu0 0
  %77 = vmatprep.subr.bf16.mxu0 0
  %78 = vmatpush1.bf16.msra.mxu0 0
  %79 = vmatprep.subr.bf16.mxu0 0
  %80 = vmatpush1.bf16.msra.mxu0 0
  %81 = vmatprep.subr.bf16.mxu0 0
  %82 = vmatpush1.bf16.msra.mxu0 0
  %83 = vmatprep.mubr.bf16.mxu0 0
  %84 = vmatmul.mubr.bf16.gmra.mrb[0].mxu0 %v49
  %v85 = vpop.f32.mrb[0].mxu0
  %v86 = vadd.f32 0.0, %v85
  %v87 = vpop.f32.mrb[0].mxu0
  %v88 = vpop.f32.mrb[0].mxu0
  %v89 = vadd.f32 0.0, %v88
  %v90 = vpop.f32.mrb[0].mxu0
  %91 = vdwg.mxu0
  %v92 = vadd.f32 %v22, %v86
  %v93 = vadd.f32 %v23, %v89
  %94 = vst.msk [vmem:[#allocation2] sm:$0xff] %vm47, %v92
  %95 = vst.msk [vmem:[#allocation2 + $0x8] sm:$0xff] %vm47, %v93
  // Predicated region
  $region18: #{transformer_forward.11} parent=0 // pred_check
    %p96 = pneg %p15
  $region19: #{transformer_forward.11} parent=0 // pred_check_branch
    %98 = sbr.rel (%p96) target = $region21
  $region20: #{transformer_forward.11} parent=0 // pred_region
    %v99 = vld [vmem:[#allocation2] sm:$0xff]
    %v100 = vld [vmem:[#allocation2 + $0x8] sm:$0xff]
    %v101 = vld [vmem:[%s2] sm:$0xf]
    %v102 = vld [vmem:[%s2 + $0x4] sm:$0xf]
    %v103 = vunpack.c.l.bf16 %v101
    %v104 = vunpack.c.l.bf16 %v102
    %v105 = vadd.f32 %v99, %v103
    %v106 = vadd.f32 %v100, %v104
    %v107 = vpack.c.bf16 %v106, %v105
    %v109 = vunpack.c.l.b16 %v107
    %v110 = vunpack.c.h.b16 %v107
    %v111 = vpack.c.b16 %v109, %v109
    %v112 = vpack.c.b16 %v110, %v110
    %vm115 = vcmask 257024
    %116 = vst.msk [vmem:[%s3] sm:$0xf] %vm115, %v111
    %117 = vst.msk [vmem:[%s3 + $0x4] sm:$0xf] %vm115, %v112
  $region21: #{transformer_forward.11} parent=0 // pred_fallthru
    _
  // Predicated region
  $region22: #{transformer_forward.11} parent=0 // pred_check
    _
  $region23: #{transformer_forward.11} parent=0 // pred_check_branch
    %119 = sbr.rel (0) target = $region25
  $region24: #{transformer_forward.11} parent=0 // pred_region
    _
  $region25: #{transformer_forward.11} parent=0 // pred_fallthru
    _
  // Predicated region
  $region26: #{transformer_forward.11} parent=0 // pred_check
    _
  $region27: #{transformer_forward.11} parent=0 // pred_check_branch
    %121 = sbr.rel (0) target = $region29
  $region28: #{transformer_forward.11} parent=0 // pred_region
    _
  $region29: #{transformer_forward.11} parent=0 // pred_fallthru
    _

// kernel: transformer_forward.12
$region0: #{transformer_forward.12}
  #allocation0 [shape = 'u32[]', space=smem, size = 0x4, offset = 0x4, fixed_abs, tag = 'smem constant byte address 0x4 - core index']
  #allocation1 [shape = 'u32[144,128]{1,0:T(1,128)}', space=vmem, size = 0x12000, scoped, tag = 'internal scratch']
  #allocation2 [shape = 'bf16[16,32]{1,0:T(16,128)(2,1)}', space=vmem, size = 0x1000, scoped, tag = 'scratch operand']
  #allocation3 [shape = 'f32[16,32]{1,0:T(8,128)}', space=vmem, size = 0x2000, scoped, tag = 'scratch operand']
  %s0 = inlined_call_operand.vmem [shape: bf16[16,32], index: 0, kind: input, shape index: {}]
  %s1 = inlined_call_operand.vmem [shape: f32[1,32], index: 1, kind: input, shape index: {}]
  %s2 = inlined_call_operand.vmem [shape: bf16[32,96], index: 2, kind: input, shape index: {}]
  %s3 = inlined_call_operand.vmem [shape: bf16[32,96], index: 3, kind: input, shape index: {}]
  %s4 = inlined_call_operand.vmem [shape: bf16[96,32], index: 4, kind: input, shape index: {}]
  %s5 = inlined_call_operand.vmem [shape: bf16[16,32], index: 5, kind: output, shape index: {}]
  %s6 = sld [smem:[#allocation0]]
  $region38: #{transformer_forward.12} parent=0
    _
  %s8 = ssub.s32 1, %s6
  %s9 = scalar_select 0, %s8, %s6
  // Predicated region
  $region2: #{transformer_forward.12} parent=0 // pred_check
    _
  $region3: #{transformer_forward.12} parent=0 // pred_check_branch
    %11 = sbr.rel (0) target = $region5
  $region4: #{transformer_forward.12} parent=0 // pred_region
    _
  $region5: #{transformer_forward.12} parent=0 // pred_fallthru
    _
  // Predicated region
  $region6: #{transformer_forward.12} parent=0 // pred_check
    _
  $region7: #{transformer_forward.12} parent=0 // pred_check_branch
    %13 = sbr.rel (0) target = $region9
  $region8: #{transformer_forward.12} parent=0 // pred_region
    _
  $region9: #{transformer_forward.12} parent=0 // pred_fallthru
    _
  // Predicated region
  $region10: #{transformer_forward.12} parent=0 // pred_check
    _
  $region11: #{transformer_forward.12} parent=0 // pred_check_branch
    %15 = sbr.rel (0) target = $region13
  $region12: #{transformer_forward.12} parent=0 // pred_region
    _
  $region13: #{transformer_forward.12} parent=0 // pred_fallthru
    _
  // Predicated region
  $region14: #{transformer_forward.12} parent=0 // pred_check
    _
  $region15: #{transformer_forward.12} parent=0 // pred_check_branch
    %17 = sbr.rel (0) target = $region17
  $region16: #{transformer_forward.12} parent=0 // pred_region
    _
  $region17: #{transformer_forward.12} parent=0 // pred_fallthru
    _
  // Predicated region
  $region18: #{transformer_forward.12} parent=0 // pred_check
    _
  $region19: #{transformer_forward.12} parent=0 // pred_check_branch
    %19 = sbr.rel (0) target = $region21
  $region20: #{transformer_forward.12} parent=0 // pred_region
    _
  $region21: #{transformer_forward.12} parent=0 // pred_fallthru
    _
  %p21 = scmp.eq.s32.totalorder 0, 0
  // Predicated region
  $region22: #{transformer_forward.12} parent=0 // pred_check
    %p22 = pneg %p21
  $region23: #{transformer_forward.12} parent=0 // pred_check_branch
    %24 = sbr.rel (%p22) target = $region25
  $region24: #{transformer_forward.12} parent=0 // pred_region
    %v25 = vld [vmem:[%s0] sm:$0xf]
    %v26 = vld [vmem:[%s0 + $0x4] sm:$0xf]
    %v27 = vunpack.c.l.bf16 %v25
    %v28 = vunpack.c.l.bf16 %v26
    %v29 = vmul.f32 %v27, %v27
    %v30 = vmul.f32 %v28, %v28
    %vm31 = vcmask 261120
    %v32 = vsel %vm31, %v29, 0.0
    %33 = vadd.xlane.f32.xlu0 %v32
    %v34 = vpop.xlane.xlu0 %33
    %v35 = vsel %vm31, %v30, 0.0
    %36 = vadd.xlane.f32.xlu0 %v35
    %v37 = vpop.xlane.xlu0 %36
    %v38 = vrcp.pop 32.0
    %v39 = vmul.f32 %v34, %v38
    %v40 = vmul.f32 %v37, %v38
    %v41 = vadd.f32 %v39, 1e-05
    %v42 = vadd.f32 %v40, 1e-05
    %v43 = vrsqrt.pop %v41
    %v44 = vrsqrt.pop %v42
    %v45 = vmul.f32 %v27, %v43
    %v46 = vmul.f32 %v28, %v44
    %v47 = vld [vmem:[%s1] sm:$0x1]
    %v49 = vlaneseq
    %v50 = vshrl.u32 %v49, 7
    %v51 = vsub.s32 0, %v50
    %v52 = vrot.slane %v47, %v51
    %v54 = vmul.f32 %v45, %v52
    %v55 = vmul.f32 %v46, %v52
    %v56 = vpack.c.bf16 %v55, %v54
    %57 = vst.msk [vmem:[#allocation2] sm:$0xff] %vm31, %v56
    %58 = vst.msk [vmem:[#allocation3] sm:$0xff] %vm31, 0.0
    %59 = vst.msk [vmem:[#allocation3 + $0x8] sm:$0xff] %vm31, 0.0
  $region25: #{transformer_forward.12} parent=0 // pred_fallthru
    _
  %v60 = vld [vmem:[#allocation2] sm:$0xff]
  %v61 = vld [vmem:[%s2] sm:$0xf]
  %v62 = vld [vmem:[%s2 + $0x4] sm:$0xf]
  %v63 = vld [vmem:[%s2 + $0x8] sm:$0xf]
  %v64 = vld [vmem:[%s2 + $0xc] sm:$0xf]
  %v69 = vunpack.c.l.b16 %v61
  %v70 = vunpack.c.l.b16 %v62
  %v71 = vunpack.c.l.b16 %v63
  %v72 = vunpack.c.l.b16 %v64
  %v73 = vpack.c.b16 %v70, %v69
  %v74 = vpack.c.b16 %v72, %v71
  %vm77 = vcmask 261120
  %v79 = vsel %vm77, %v60, 0
  %81 = vmatprep.subr.bf16.mxu0 0
  %82 = vmatpush1.bf16.msra.mxu0 %v73
  %83 = vmatprep.subr.bf16.mxu0 0
  %84 = vmatpush1.bf16.msra.mxu0 %v74
  %85 = vmatprep.subr.bf16.mxu0 0
  %86 = vmatpush1.bf16.msra.mxu0 0
  %87 = vmatprep.subr.bf16.mxu0 0
  %88 = vmatpush1.bf16.msra.mxu0 0
  %89 = vmatprep.subr.bf16.mxu0 0
  %90 = vmatpush1.bf16.msra.mxu0 0
  %91 = vmatprep.subr.bf16.mxu0 0
  %92 = vmatpush1.bf16.msra.mxu0 0
  %93 = vmatprep.subr.bf16.mxu0 0
  %94 = vmatpush1.bf16.msra.mxu0 0
  %95 = vmatprep.subr.bf16.mxu0 0
  %96 = vmatpush1.bf16.msra.mxu0 0
  %97 = vmatprep.subr.bf16.mxu0 0
  %98 = vmatpush1.bf16.msra.mxu0 0
  %99 = vmatprep.subr.bf16.mxu0 0
  %100 = vmatpush1.bf16.msra.mxu0 0
  %101 = vmatprep.subr.bf16.mxu0 0
  %102 = vmatpush1.bf16.msra.mxu0 0
  %103 = vmatprep.subr.bf16.mxu0 0
  %104 = vmatpush1.bf16.msra.mxu0 0
  %105 = vmatprep.subr.bf16.mxu0 0
  %106 = vmatpush1.bf16.msra.mxu0 0
  %107 = vmatprep.subr.bf16.mxu0 0
  %108 = vmatpush1.bf16.msra.mxu0 0
  %109 = vmatprep.subr.bf16.mxu0 0
  %110 = vmatpush1.bf16.msra.mxu0 0
  %111 = vmatprep.subr.bf16.mxu0 0
  %112 = vmatpush1.bf16.msra.mxu0 0
  %113 = vmatprep.mubr.bf16.mxu0 0
  %114 = vmatmul.mubr.bf16.gmra.mrb[0].mxu0 %v79
  %v115 = vpop.f32.mrb[0].mxu0
  %v116 = vadd.f32 0.0, %v115
  %v117 = vpop.f32.mrb[0].mxu0
  %v118 = vpop.f32.mrb[0].mxu0
  %v119 = vadd.f32 0.0, %v118
  %v120 = vpop.f32.mrb[0].mxu0
  %121 = vdwg.mxu0
  %v122 = vld [vmem:[%s3] sm:$0xf]
  %v123 = vld [vmem:[%s3 + $0x4] sm:$0xf]
  %v124 = vld [vmem:[%s3 + $0x8] sm:$0xf]
  %v125 = vld [vmem:[%s3 + $0xc] sm:$0xf]
  %v130 = vunpack.c.l.b16 %v122
  %v131 = vunpack.c.l.b16 %v123
  %v132 = vunpack.c.l.b16 %v124
  %v133 = vunpack.c.l.b16 %v125
  %v134 = vpack.c.b16 %v131, %v130
  %v135 = vpack.c.b16 %v133, %v132
  %138 = vmatprep.subr.bf16.mxu0 0
  %139 = vmatpush1.bf16.msra.mxu0 %v134
  %140 = vmatprep.subr.bf16.mxu0 0
  %141 = vmatpush1.bf16.msra.mxu0 %v135
  %142 = vmatprep.subr.bf16.mxu0 0
  %143 = vmatpush1.bf16.msra.mxu0 0
  %144 = vmatprep.subr.bf16.mxu0 0
  %145 = vmatpush1.bf16.msra.mxu0 0
  %146 = vmatprep.subr.bf16.mxu0 0
  %147 = vmatpush1.bf16.msra.mxu0 0
  %148 = vmatprep.subr.bf16.mxu0 0
  %149 = vmatpush1.bf16.msra.mxu0 0
  %150 = vmatprep.subr.bf16.mxu0 0
  %151 = vmatpush1.bf16.msra.mxu0 0
  %152 = vmatprep.subr.bf16.mxu0 0
  %153 = vmatpush1.bf16.msra.mxu0 0
  %154 = vmatprep.subr.bf16.mxu0 0
  %155 = vmatpush1.bf16.msra.mxu0 0
  %156 = vmatprep.subr.bf16.mxu0 0
  %157 = vmatpush1.bf16.msra.mxu0 0
  %158 = vmatprep.subr.bf16.mxu0 0
  %159 = vmatpush1.bf16.msra.mxu0 0
  %160 = vmatprep.subr.bf16.mxu0 0
  %161 = vmatpush1.bf16.msra.mxu0 0
  %162 = vmatprep.subr.bf16.mxu0 0
  %163 = vmatpush1.bf16.msra.mxu0 0
  %164 = vmatprep.subr.bf16.mxu0 0
  %165 = vmatpush1.bf16.msra.mxu0 0
  %166 = vmatprep.subr.bf16.mxu0 0
  %167 = vmatpush1.bf16.msra.mxu0 0
  %168 = vmatprep.subr.bf16.mxu0 0
  %169 = vmatpush1.bf16.msra.mxu0 0
  %170 = vmatprep.mubr.bf16.mxu0 0
  %171 = vmatmul.mubr.bf16.gmra.mrb[0].mxu0 %v79
  %v172 = vpop.f32.mrb[0].mxu0
  %v173 = vadd.f32 0.0, %v172
  %v174 = vpop.f32.mrb[0].mxu0
  %v175 = vpop.f32.mrb[0].mxu0
  %v176 = vadd.f32 0.0, %v175
  %v177 = vpop.f32.mrb[0].mxu0
  %178 = vdwg.mxu0
  %v179 = vxor.u32 %v116, 2147483648
  %v180 = vxor.u32 %v119, 2147483648
  %v181 = vmul.f32 %v179, 1.442695
  %v182 = vpow.pop %v181
  %v183 = vmul.f32 %v180, 1.442695
  %v184 = vpow.pop %v183
  %v185 = vadd.f32 %v182, 1.0
  %v186 = vadd.f32 %v184, 1.0
  %v187 = vrcp.pop %v185
  %v188 = vmul.f32 1.0, %v187
  %v189 = vrcp.pop %v186
  %v190 = vmul.f32 1.0, %v189
  %v191 = vmul.f32 %v116, %v188
  %v192 = vmul.f32 %v119, %v190
  %v193 = vmul.f32 %v191, %v173
  %v194 = vmul.f32 %v192, %v176
  %v195 = vpack.c.bf16 %v194, %v193
  %v196 = vld [vmem:[#allocation3] sm:$0xff]
  %v197 = vld [vmem:[#allocation3 + $0x8] sm:$0xff]
  %v198 = vld [vmem:[%s4] sm:$0xf]
  %v199 = vld [vmem:[%s4 + $0x4] sm:$0xf]
  %v200 = vld [vmem:[%s4 + $0x8] sm:$0xf]
  %v201 = vld [vmem:[%s4 + $0xc] sm:$0xf]
  %v202 = vld [vmem:[%s4 + $0x10] sm:$0xf]
  %v203 = vld [vmem:[%s4 + $0x14] sm:$0xf]
  %v204 = vld [vmem:[%s4 + $0x18] sm:$0xf]
  %v205 = vld [vmem:[%s4 + $0x1c] sm:$0xf]
  %v206 = vld [vmem:[%s4 + $0x20] sm:$0xf]
  %v207 = vld [vmem:[%s4 + $0x24] sm:$0xf]
  %v208 = vld [vmem:[%s4 + $0x28] sm:$0xf]
  %v209 = vld [vmem:[%s4 + $0x2c] sm:$0xf]
  %v222 = vunpack.c.l.b16 %v198
  %v223 = vunpack.c.l.b16 %v199
  %v224 = vunpack.c.l.b16 %v200
  %v225 = vunpack.c.l.b16 %v201
  %v226 = vunpack.c.l.b16 %v202
  %v227 = vunpack.c.l.b16 %v203
  %v228 = vunpack.c.l.b16 %v204
  %v229 = vunpack.c.l.b16 %v205
  %v230 = vunpack.c.l.b16 %v206
  %v231 = vunpack.c.l.b16 %v207
  %v232 = vunpack.c.l.b16 %v208
  %v233 = vunpack.c.l.b16 %v209
  %v234 = vpack.c.b16 %v223, %v222
  %v235 = vpack.c.b16 %v225, %v224
  %v236 = vpack.c.b16 %v227, %v226
  %v237 = vpack.c.b16 %v229, %v228
  %v238 = vpack.c.b16 %v231, %v230
  %v239 = vpack.c.b16 %v233, %v232
  %vm246 = vcmask 785408
  %v248 = vsel %vm246, %v195, 0
  %250 = vmatprep.subr.bf16.mxu0 0
  %251 = vmatpush1.bf16.msra.mxu0 %v234
  %252 = vmatprep.subr.bf16.mxu0 0
  %253 = vmatpush1.bf16.msra.mxu0 %v235
  %254 = vmatprep.subr.bf16.mxu0 0
  %255 = vmatpush1.bf16.msra.mxu0 %v236
  %256 = vmatprep.subr.bf16.mxu0 0
  %257 = vmatpush1.bf16.msra.mxu0 %v237
  %258 = vmatprep.subr.bf16.mxu0 0
  %259 = vmatpush1.bf16.msra.mxu0 %v238
  %260 = vmatprep.subr.bf16.mxu0 0
  %261 = vmatpush1.bf16.msra.mxu0 %v239
  %262 = vmatprep.subr.bf16.mxu0 0
  %263 = vmatpush1.bf16.msra.mxu0 0
  %264 = vmatprep.subr.bf16.mxu0 0
  %265 = vmatpush1.bf16.msra.mxu0 0
  %266 = vmatprep.subr.bf16.mxu0 0
  %267 = vmatpush1.bf16.msra.mxu0 0
  %268 = vmatprep.subr.bf16.mxu0 0
  %269 = vmatpush1.bf16.msra.mxu0 0
  %270 = vmatprep.subr.bf16.mxu0 0
  %271 = vmatpush1.bf16.msra.mxu0 0
  %272 = vmatprep.subr.bf16.mxu0 0
  %273 = vmatpush1.bf16.msra.mxu0 0
  %274 = vmatprep.subr.bf16.mxu0 0
  %275 = vmatpush1.bf16.msra.mxu0 0
  %276 = vmatprep.subr.bf16.mxu0 0
  %277 = vmatpush1.bf16.msra.mxu0 0
  %278 = vmatprep.subr.bf16.mxu0 0
  %279 = vmatpush1.bf16.msra.mxu0 0
  %280 = vmatprep.subr.bf16.mxu0 0
  %281 = vmatpush1.bf16.msra.mxu0 0
  %282 = vmatprep.mubr.bf16.mxu0 0
  %283 = vmatmul.mubr.bf16.gmra.mrb[0].mxu0 %v248
  %v284 = vpop.f32.mrb[0].mxu0
  %v285 = vadd.f32 0.0, %v284
  %v286 = vpop.f32.mrb[0].mxu0
  %v287 = vpop.f32.mrb[0].mxu0
  %v288 = vadd.f32 0.0, %v287
  %v289 = vpop.f32.mrb[0].mxu0
  %290 = vdwg.mxu0
  %v291 = vadd.f32 %v196, %v285
  %v292 = vadd.f32 %v197, %v288
  %293 = vst.msk [vmem:[#allocation3] sm:$0xff] %vm77, %v291
  %294 = vst.msk [vmem:[#allocation3 + $0x8] sm:$0xff] %vm77, %v292
  // Predicated region
  $region26: #{transformer_forward.12} parent=0 // pred_check
    %p295 = pneg %p21
  $region27: #{transformer_forward.12} parent=0 // pred_check_branch
    %297 = sbr.rel (%p295) target = $region29
  $region28: #{transformer_forward.12} parent=0 // pred_region
    %v298 = vld [vmem:[%s0] sm:$0xf]
    %v299 = vld [vmem:[%s0 + $0x4] sm:$0xf]
    %v300 = vunpack.c.l.bf16 %v298
    %v301 = vunpack.c.l.bf16 %v299
    %v302 = vld [vmem:[#allocation3] sm:$0xff]
    %v303 = vld [vmem:[#allocation3 + $0x8] sm:$0xff]
    %v304 = vadd.f32 %v300, %v302
    %v305 = vadd.f32 %v301, %v303
    %v306 = vpack.c.bf16 %v305, %v304
    %v308 = vunpack.c.l.b16 %v306
    %v309 = vunpack.c.h.b16 %v306
    %v310 = vpack.c.b16 %v308, %v308
    %v311 = vpack.c.b16 %v309, %v309
    %vm314 = vcmask 257024
    %315 = vst.msk [vmem:[%s5] sm:$0xf] %vm314, %v310
    %316 = vst.msk [vmem:[%s5 + $0x4] sm:$0xf] %vm314, %v311
  $region29: #{transformer_forward.12} parent=0 // pred_fallthru
    _
  // Predicated region
  $region30: #{transformer_forward.12} parent=0 // pred_check
    _
  $region31: #{transformer_forward.12} parent=0 // pred_check_branch
    %318 = sbr.rel (0) target = $region33
  $region32: #{transformer_forward.12} parent=0 // pred_region
    _
  $region33: #{transformer_forward.12} parent=0 // pred_fallthru
    _
  // Predicated region
  $region34: #{transformer_forward.12} parent=0 // pred_check
    _
  $region35: #{transformer_forward.12} parent=0 // pred_check_branch
    %320 = sbr.rel (0) target = $region37
  $region36: #{transformer_forward.12} parent=0 // pred_region
    _
  $region37: #{transformer_forward.12} parent=0 // pred_fallthru
    _

// kernel: transformer_forward.10
$region0: #{transformer_forward.10}
  #allocation0 [shape = 'u32[]', space=smem, size = 0x4, offset = 0x4, fixed_abs, tag = 'smem constant byte address 0x4 - core index']
  #allocation1 [shape = 'u32[144,128]{1,0:T(1,128)}', space=vmem, size = 0x12000, scoped, tag = 'internal scratch']
  #allocation2 [shape = 'f32[8,4]{1,0:T(8,128)}', space=vmem, size = 0x1000, scoped, tag = 'scratch operand']
  #allocation3 [shape = 'f32[8,4]{1,0:T(8,128)}', space=vmem, size = 0x1000, scoped, tag = 'scratch operand']
  #allocation4 [shape = 'f32[8,32]{1,0:T(8,128)}', space=vmem, size = 0x1000, scoped, tag = 'scratch operand']
  %s0 = inlined_call_operand.vmem [shape: bf16[2,8,32], index: 0, kind: input, shape index: {}]
  %s1 = inlined_call_operand.vmem [shape: bf16[2,8,16], index: 1, kind: input, shape index: {}]
  %s2 = inlined_call_operand.vmem [shape: bf16[2,8,16], index: 2, kind: input, shape index: {}]
  %s3 = inlined_call_operand.vmem [shape: f32[8,8], index: 3, kind: input, shape index: {}]
  %s4 = inlined_call_operand.vmem [shape: bf16[2,8,32], index: 4, kind: output, shape index: {}]
  %s5 = sld [smem:[#allocation0]]
  $region57: #{transformer_forward.10} parent=0
    _
  %s7 = ssub.s32 1, %s5
  %s8 = scalar_select 0, %s7, %s5
  loop: start=0, step=1, limit=4
  $region2: #{transformer_forward.10} parent=0 // loop_pre_header
    _
  $region3: #{transformer_forward.10} parent=0 // loop_header
    %s10 = sphi 0, %s14
    %p11 = scmp.ge.s32.totalorder %s10, 4
    %s17 = sphi 0, %s36
    %s18 = sphi 0, %s32
    %s19 = sphi 0, %s28
    %s20 = sphi 0, %s17
    %s21 = sphi 0, %s18
    %s22 = sphi 0, %s19
    %s23 = sphi 0, %s20
    %s24 = sphi 0, %s21
    %s25 = sphi 0, %s22
    %s41 = sphi 0, %s43
    %s44 = sphi 0, %s41
    %s45 = sphi 0, %s44
    %s61 = sphi 0, %s45
    %s69 = sphi 0, %s71
    %s72 = sphi 0, %s69
    %s73 = sphi 0, %s72
    %s89 = sphi 0, %s73
    %s97 = sphi 0, %s99
    %s100 = sphi 0, %s97
    %s101 = sphi 0, %s100
    %s117 = sphi 0, %s101
    %s125 = sphi 0, %s127
    %s128 = sphi 0, %s125
    %s129 = sphi 0, %s128
    %s145 = sphi 0, %s129
    %s153 = sphi 0, %s155
    %s156 = sphi 0, %s153
    %s157 = sphi 0, %s156
    %s173 = sphi 0, %s157
  $region4: #{transformer_forward.10} parent=0 // loop_header_branch
    %13 = sbr.rel (%p11) target = $region8
  $region5: #{transformer_forward.10} parent=0 // loop_body
    %s15 = ssub.s32 %s10, 1
    %s16 = ssub.s32 %s10, 2
    %s26 = sadd.s32 1, %s19
    %p27 = scmp.ge.s32.totalorder %s26, 1
    %s28 = scalar_select %p27, 0, %s26
    %s29 = sadd.s32 1, %s18
    %s30 = scalar_select %p27, %s29, %s18
    %p31 = scmp.ge.s32.totalorder %s30, 1
    %s32 = scalar_select %p31, 0, %s30
    %s33 = sadd.s32 1, %s17
    %s34 = scalar_select %p31, %s33, %s17
    %p35 = scmp.ge.s32.totalorder %s34, 2
    %s36 = scalar_select %p35, 0, %s34
    %s37 = ssub.s32 %s17, %s36
    %s38 = ssub.s32 %s18, %s32
    %s39 = sor.u32 %s37, %s38
    %p40 = scmp.eq.s32.totalorder %s39, 0
    %s42 = sadd.s32 %s41, 1
    %s43 = scalar_select %p40, %s41, %s42
    %p46 = pneg %p40
    %p47 = scmp.eq.s32.totalorder %s10, 1
    %p48 = por %p46, %p47
    %p49 = scmp.ne.s32.totalorder %s41, %s44
    %p50 = scmp.eq.s32.totalorder %s10, 0
    %p51 = por %p49, %p50
    %p52 = scmp.ne.s32.totalorder %s41, %s44
    %p53 = scmp.eq.s32.totalorder %s15, 1
    %p54 = por %p52, %p53
    %p55 = scmp.ne.s32.totalorder %s44, %s45
    %p56 = scmp.eq.s32.totalorder %s15, 0
    %p57 = por %p55, %p56
    %p58 = scmp.ne.s32.totalorder %s44, %s45
    %p59 = scmp.eq.s32.totalorder %s16, 1
    %p60 = por %p58, %p59
    %p62 = scmp.ne.s32.totalorder %s45, %s61
    %p63 = scmp.eq.s32.totalorder %s16, 0
    %p64 = por %p62, %p63
    %s65 = ssub.s32 %s17, %s36
    %s66 = ssub.s32 %s19, %s28
    %s67 = sor.u32 %s65, %s66
    %p68 = scmp.eq.s32.totalorder %s67, 0
    %s70 = sadd.s32 %s69, 1
    %s71 = scalar_select %p68, %s69, %s70
    %p74 = pneg %p68
    %p75 = scmp.eq.s32.totalorder %s10, 1
    %p76 = por %p74, %p75
    %p77 = scmp.ne.s32.totalorder %s69, %s72
    %p78 = scmp.eq.s32.totalorder %s10, 0
    %p79 = por %p77, %p78
    %p80 = scmp.ne.s32.totalorder %s69, %s72
    %p81 = scmp.eq.s32.totalorder %s15, 1
    %p82 = por %p80, %p81
    %p83 = scmp.ne.s32.totalorder %s72, %s73
    %p84 = scmp.eq.s32.totalorder %s15, 0
    %p85 = por %p83, %p84
    %p86 = scmp.ne.s32.totalorder %s72, %s73
    %p87 = scmp.eq.s32.totalorder %s16, 1
    %p88 = por %p86, %p87
    %p90 = scmp.ne.s32.totalorder %s73, %s89
    %p91 = scmp.eq.s32.totalorder %s16, 0
    %p92 = por %p90, %p91
    %s93 = ssub.s32 %s17, %s36
    %s94 = ssub.s32 %s19, %s28
    %s95 = sor.u32 %s93, %s94
    %p96 = scmp.eq.s32.totalorder %s95, 0
    %s98 = sadd.s32 %s97, 1
    %s99 = scalar_select %p96, %s97, %s98
    %p102 = pneg %p96
    %p103 = scmp.eq.s32.totalorder %s10, 1
    %p104 = por %p102, %p103
    %p105 = scmp.ne.s32.totalorder %s97, %s100
    %p106 = scmp.eq.s32.totalorder %s10, 0
    %p107 = por %p105, %p106
    %p108 = scmp.ne.s32.totalorder %s97, %s100
    %p109 = scmp.eq.s32.totalorder %s15, 1
    %p110 = por %p108, %p109
    %p111 = scmp.ne.s32.totalorder %s100, %s101
    %p112 = scmp.eq.s32.totalorder %s15, 0
    %p113 = por %p111, %p112
    %p114 = scmp.ne.s32.totalorder %s100, %s101
    %p115 = scmp.eq.s32.totalorder %s16, 1
    %p116 = por %p114, %p115
    %p118 = scmp.ne.s32.totalorder %s101, %s117
    %p119 = scmp.eq.s32.totalorder %s16, 0
    %p120 = por %p118, %p119
    %s121 = ssub.s32 %s18, %s32
    %s122 = ssub.s32 %s19, %s28
    %s123 = sor.u32 %s121, %s122
    %p124 = scmp.eq.s32.totalorder %s123, 0
    %s126 = sadd.s32 %s125, 1
    %s127 = scalar_select %p124, %s125, %s126
    %p130 = pneg %p124
    %p131 = scmp.eq.s32.totalorder %s10, 1
    %p132 = por %p130, %p131
    %p133 = scmp.ne.s32.totalorder %s125, %s128
    %p134 = scmp.eq.s32.totalorder %s10, 0
    %p135 = por %p133, %p134
    %p136 = scmp.ne.s32.totalorder %s125, %s128
    %p137 = scmp.eq.s32.totalorder %s15, 1
    %p138 = por %p136, %p137
    %p139 = scmp.ne.s32.totalorder %s128, %s129
    %p140 = scmp.eq.s32.totalorder %s15, 0
    %p141 = por %p139, %p140
    %p142 = scmp.ne.s32.totalorder %s128, %s129
    %p143 = scmp.eq.s32.totalorder %s16, 1
    %p144 = por %p142, %p143
    %p146 = scmp.ne.s32.totalorder %s129, %s145
    %p147 = scmp.eq.s32.totalorder %s16, 0
    %p148 = por %p146, %p147
    %s149 = ssub.s32 %s17, %s36
    %s150 = ssub.s32 %s18, %s32
    %s151 = sor.u32 %s149, %s150
    %p152 = scmp.eq.s32.totalorder %s151, 0
    %s154 = sadd.s32 %s153, 1
    %s155 = scalar_select %p152, %s153, %s154
    %p158 = pneg %p152
    %p159 = scmp.eq.s32.totalorder %s10, 1
    %p160 = por %p158, %p159
    %p161 = scmp.ne.s32.totalorder %s153, %s156
    %p162 = scmp.eq.s32.totalorder %s10, 0
    %p163 = por %p161, %p162
    %p164 = scmp.ne.s32.totalorder %s153, %s156
    %p165 = scmp.eq.s32.totalorder %s15, 1
    %p166 = por %p164, %p165
    %p167 = scmp.ne.s32.totalorder %s156, %s157
    %p168 = scmp.eq.s32.totalorder %s15, 0
    %p169 = por %p167, %p168
    %p170 = scmp.ne.s32.totalorder %s156, %s157
    %p171 = scmp.eq.s32.totalorder %s16, 1
    %p172 = por %p170, %p171
    %p174 = scmp.ne.s32.totalorder %s157, %s173
    %p175 = scmp.eq.s32.totalorder %s16, 0
    %p176 = por %p174, %p175
    %p177 = scmp.le.s32.totalorder 1, %s10
    %p178 = scmp.lt.s32.totalorder %s10, 3
    %p179 = pnand %p177, %p178
    %p180 = pneg %p179
    // Predicated region
    $region9: #{transformer_forward.10} parent=5 // pred_check
      _
    $region10: #{transformer_forward.10} parent=5 // pred_check_branch
      %182 = sbr.rel (%p179) target = $region12
    $region11: #{transformer_forward.10} parent=5 // pred_region
      %s183 = ssub.s32 %s10, 1
      // Predicated region
      $region13: #{transformer_forward.10} parent=11 // pred_check
        %p184 = pneg %p141
      $region14: #{transformer_forward.10} parent=11 // pred_check_branch
        %186 = sbr.rel (%p184) target = $region16
      $region15: #{transformer_forward.10} parent=11 // pred_region
        %p187 = scmp.lt.s32.totalorder %s21, 0
        %s188 = scalar_select %p187, %s21, 0
        %p189 = scmp.lt.s32.totalorder %s22, 0
        %s190 = scalar_select %p189, %s22, 0
        %s191 = sadd.s32 %s190, %s188
        %s192 = smul.addr %s191, 8
        %s193 = scalar_lea.vmem %s3, %s192
      $region16: #{transformer_forward.10} parent=11 // pred_fallthru
        _
    $region12: #{transformer_forward.10} parent=5 // pred_fallthru
      _
    %p194 = scmp.lt.s32.totalorder %s10, 2
    // Predicated region
    $region17: #{transformer_forward.10} parent=5 // pred_check
      %p195 = pneg %p194
    $region18: #{transformer_forward.10} parent=5 // pred_check_branch
      %197 = sbr.rel (%p195) target = $region20
    $region19: #{transformer_forward.10} parent=5 // pred_region
      // Predicated region
      $region21: #{transformer_forward.10} parent=19 // pred_check
        %p198 = pneg %p51
      $region22: #{transformer_forward.10} parent=19 // pred_check_branch
        %200 = sbr.rel (%p198) target = $region24
      $region23: #{transformer_forward.10} parent=19 // pred_region
        %p201 = scmp.lt.s32.totalorder %s17, 1
        %s202 = scalar_select %p201, %s17, 1
        %p203 = scmp.lt.s32.totalorder %s18, 0
        %s204 = scalar_select %p203, %s18, 0
        %s205 = sadd.s32 %s204, %s202
        %s206 = smul.addr %s205, 4
        %s207 = scalar_lea.vmem %s0, %s206
      $region24: #{transformer_forward.10} parent=19 // pred_fallthru
        _
      // Predicated region
      $region25: #{transformer_forward.10} parent=19 // pred_check
        %p208 = pneg %p79
      $region26: #{transformer_forward.10} parent=19 // pred_check_branch
        %210 = sbr.rel (%p208) target = $region28
      $region27: #{transformer_forward.10} parent=19 // pred_region
        %p211 = scmp.lt.s32.totalorder %s17, 1
        %s212 = scalar_select %p211, %s17, 1
        %p213 = scmp.lt.s32.totalorder %s19, 0
        %s214 = scalar_select %p213, %s19, 0
        %s215 = sadd.s32 %s214, %s212
        %s216 = smul.addr %s215, 4
        %s217 = scalar_lea.vmem %s1, %s216
      $region28: #{transformer_forward.10} parent=19 // pred_fallthru
        _
      // Predicated region
      $region29: #{transformer_forward.10} parent=19 // pred_check
        %p218 = pneg %p107
      $region30: #{transformer_forward.10} parent=19 // pred_check_branch
        %220 = sbr.rel (%p218) target = $region32
      $region31: #{transformer_forward.10} parent=19 // pred_region
        %p221 = scmp.lt.s32.totalorder %s17, 1
        %s222 = scalar_select %p221, %s17, 1
        %p223 = scmp.lt.s32.totalorder %s19, 0
        %s224 = scalar_select %p223, %s19, 0
        %s225 = sadd.s32 %s224, %s222
        %s226 = smul.addr %s225, 4
        %s227 = scalar_lea.vmem %s2, %s226
      $region32: #{transformer_forward.10} parent=19 // pred_fallthru
        _
    $region20: #{transformer_forward.10} parent=5 // pred_fallthru
      _
    %p228 = scmp.le.s32.totalorder 1, %s10
    %p229 = scmp.lt.s32.totalorder %s10, 3
    %p230 = pnand %p228, %p229
    %p231 = pneg %p230
    // Predicated region
    $region33: #{transformer_forward.10} parent=5 // pred_check
      _
    $region34: #{transformer_forward.10} parent=5 // pred_check_branch
      %233 = sbr.rel (%p230) target = $region36
    $region35: #{transformer_forward.10} parent=5 // pred_region
      %s234 = ssub.s32 %s10, 1
      %p235 = scmp.lt.s32.totalorder %s20, 1
      %s236 = scalar_select %p235, %s20, 1
      %p237 = scmp.lt.s32.totalorder %s21, 0
      %s238 = scalar_select %p237, %s21, 0
      %s239 = sadd.s32 %s238, %s236
      %s240 = smul.addr %s239, 4
      %s241 = scalar_lea.vmem %s0, %s240
      %p242 = pneg %p57
      %p243 = pneg %p54
      %p244 = scmp.lt.s32.totalorder %s20, 1
      %s245 = scalar_select %p244, %s20, 1
      %p246 = scmp.lt.s32.totalorder %s22, 0
      %s247 = scalar_select %p246, %s22, 0
      %s248 = sadd.s32 %s247, %s245
      %s249 = smul.addr %s248, 4
      %s250 = scalar_lea.vmem %s1, %s249
      %p251 = pneg %p85
      %p252 = pneg %p82
      %p253 = scmp.lt.s32.totalorder %s20, 1
      %s254 = scalar_select %p253, %s20, 1
      %p255 = scmp.lt.s32.totalorder %s22, 0
      %s256 = scalar_select %p255, %s22, 0
      %s257 = sadd.s32 %s256, %s254
      %s258 = smul.addr %s257, 4
      %s259 = scalar_lea.vmem %s2, %s258
      %p260 = pneg %p113
      %p261 = pneg %p110
      %p262 = scmp.lt.s32.totalorder %s21, 0
      %s263 = scalar_select %p262, %s21, 0
      %p264 = scmp.lt.s32.totalorder %s22, 0
      %s265 = scalar_select %p264, %s22, 0
      %s266 = sadd.s32 %s265, %s263
      %s267 = smul.addr %s266, 8
      %s268 = scalar_lea.vmem %s3, %s267
      %p269 = pneg %p141
      %p270 = pneg %p138
      %p271 = pneg %p169
      %p272 = pneg %p166
      %p273 = scmp.lt.s32.totalorder %s20, 1
      %s274 = scalar_select %p273, %s20, 1
      %p275 = scmp.lt.s32.totalorder %s21, 0
      %s276 = scalar_select %p275, %s21, 0
      %s277 = sadd.s32 %s276, %s274
      %s278 = smul.addr %s277, 4
      %s279 = scalar_lea.vmem %s4, %s278
      %p280 = scmp.lt.s32.totalorder %s20, 1
      %s281 = scalar_select %p280, %s20, 1
      %p282 = scmp.lt.s32.totalorder %s21, 0
      %s283 = scalar_select %p282, %s21, 0
      %s284 = sadd.s32 %s283, %s281
      %s285 = smul.addr %s284, 4
      %s286 = scalar_lea.vmem %s0, %s285
      %p287 = scmp.lt.s32.totalorder %s20, 1
      %s288 = scalar_select %p287, %s20, 1
      %p289 = scmp.lt.s32.totalorder %s22, 0
      %s290 = scalar_select %p289, %s22, 0
      %s291 = sadd.s32 %s290, %s288
      %s292 = smul.addr %s291, 4
      %s293 = scalar_lea.vmem %s1, %s292
      %p294 = scmp.lt.s32.totalorder %s20, 1
      %s295 = scalar_select %p294, %s20, 1
      %p296 = scmp.lt.s32.totalorder %s22, 0
      %s297 = scalar_select %p296, %s22, 0
      %s298 = sadd.s32 %s297, %s295
      %s299 = smul.addr %s298, 4
      %s300 = scalar_lea.vmem %s2, %s299
      %p301 = scmp.lt.s32.totalorder %s21, 0
      %s302 = scalar_select %p301, %s21, 0
      %p303 = scmp.lt.s32.totalorder %s22, 0
      %s304 = scalar_select %p303, %s22, 0
      %s305 = sadd.s32 %s304, %s302
      %s306 = smul.addr %s305, 8
      %s307 = scalar_lea.vmem %s3, %s306
      %p308 = scmp.lt.s32.totalorder %s20, 1
      %s309 = scalar_select %p308, %s20, 1
      %p310 = scmp.lt.s32.totalorder %s21, 0
      %s311 = scalar_select %p310, %s21, 0
      %s312 = sadd.s32 %s311, %s309
      %s313 = smul.addr %s312, 4
      %s314 = scalar_lea.vmem %s4, %s313
      %p316 = scmp.eq.s32.totalorder %s22, 0
      // Predicated region
      $region37: #{transformer_forward.10} parent=35 // pred_check
        %p317 = pneg %p316
      $region38: #{transformer_forward.10} parent=35 // pred_check_branch
        %319 = sbr.rel (%p317) target = $region40
      $region39: #{transformer_forward.10} parent=35 // pred_region
        %vm320 = vcmask 31744
        %321 = vst.msk [vmem:[#allocation2] sm:$0xff] %vm320, -1e+30
        %322 = vst.msk [vmem:[#allocation3] sm:$0xff] %vm320, 0.0
        %vm323 = vcmask 261120
        %324 = vst.msk [vmem:[#allocation4] sm:$0xff] %vm323, 0.0
      $region40: #{transformer_forward.10} parent=35 // pred_fallthru
        _
      %v325 = vld [vmem:[%s307] sm:$0xff]
      %v326 = vld [vmem:[%s286] sm:$0xf]
      %v327 = vld [vmem:[%s293] sm:$0xf]
      %v328 = vld [vmem:[%s300] sm:$0xf]
      %vm329 = vcmask 64512
      %v331 = vsel %vm329, %v326, 0
      %v334 = vsel %vm329, %v327, 0
      %336 = vmatprep.subr.bf16.mxu0 0
      %337 = vmatpush1.bf16.xpose.msra.mxu0 %v334
      %338 = vmatprep.subr.bf16.mxu0 0
      %339 = vmatpush1.bf16.xpose.msra.mxu0 0
      %340 = vmatprep.subr.bf16.mxu0 0
      %341 = vmatpush1.bf16.xpose.msra.mxu0 0
      %342 = vmatprep.subr.bf16.mxu0 0
      %343 = vmatpush1.bf16.xpose.msra.mxu0 0
      %344 = vmatprep.subr.bf16.mxu0 0
      %345 = vmatpush1.bf16.xpose.msra.mxu0 0
      %346 = vmatprep.subr.bf16.mxu0 0
      %347 = vmatpush1.bf16.xpose.msra.mxu0 0
      %348 = vmatprep.subr.bf16.mxu0 0
      %349 = vmatpush1.bf16.xpose.msra.mxu0 0
      %350 = vmatprep.subr.bf16.mxu0 0
      %351 = vmatpush1.bf16.xpose.msra.mxu0 0
      %352 = vmatprep.subr.bf16.mxu0 0
      %353 = vmatpush1.bf16.xpose.msra.mxu0 0
      %354 = vmatprep.subr.bf16.mxu0 0
      %355 = vmatpush1.bf16.xpose.msra.mxu0 0
      %356 = vmatprep.subr.bf16.mxu0 0
      %357 = vmatpush1.bf16.xpose.msra.mxu0 0
      %358 = vmatprep.subr.bf16.mxu0 0
      %359 = vmatpush1.bf16.xpose.msra.mxu0 0
      %360 = vmatprep.subr.bf16.mxu0 0
      %361 = vmatpush1.bf16.xpose.msra.mxu0 0
      %362 = vmatprep.subr.bf16.mxu0 0
      %363 = vmatpush1.bf16.xpose.msra.mxu0 0
      %364 = vmatprep.subr.bf16.mxu0 0
      %365 = vmatpush1.bf16.xpose.msra.mxu0 0
      %366 = vmatprep.subr.bf16.mxu0 0
      %367 = vmatpush1.bf16.xpose.msra.mxu0 0
      %368 = vmatprep.mubr.bf16.mxu0 0
      %369 = vmatmul.mubr.bf16.gmra.mrb[0].mxu0 %v331
      %v370 = vpop.f32.mrb[0].mxu0
      %v371 = vadd.f32 0.0, %v370
      %v372 = vpop.f32.mrb[0].mxu0
      %v373 = vpop.f32.mrb[0].mxu0
      %v374 = vpop.f32.mrb[0].mxu0
      %375 = vdwg.mxu0
      %v376 = vmul.f32 %v371, 0.35355338
      %v377 = vadd.f32 %v376, %v325
      %v378 = vld [vmem:[#allocation2] sm:$0xff]
      %v379 = vsel %vm329, %v377, -inf
      %380 = vmax.xlane.f32.xlu0 %v379
      %v381 = vpop.xlane.xlu0 %380
      %v382 = vmax.f32 %v378, %v381
      %v383 = vsub.f32 %v378, %v382
      %v384 = vmul.f32 %v383, 1.442695
      %v385 = vpow.pop %v384
      %387 = vset.pattern.permute.xlu0 0
      %388 = vperm.xlu0 %387, %v382
      %v389 = vpop.permute.xlu0 %388
      %v391 = vsub.f32 %v377, %v389
      %v392 = vmul.f32 %v391, 1.442695
      %v393 = vpow.pop %v392
      %v394 = vld [vmem:[#allocation3] sm:$0xff]
      %v395 = vmul.f32 %v385, %v394
      %v396 = vsel %vm329, %v393, 0.0
      %397 = vadd.xlane.f32.xlu0 %v396
      %v398 = vpop.xlane.xlu0 %397
      %v399 = vadd.f32 %v395, %v398
      %vm400 = vcmask 7168
      %401 = vst.msk [vmem:[#allocation3] sm:$0xff] %vm400, %v399
      %v402 = vpack.c.bf16 %v393, %v393
      %v404 = vsel %vm329, %v402, 0
      %vm406 = vcmask 1043456
      %v408 = vsel %vm406, %v328, 0
      %410 = vmatprep.subr.bf16.mxu0 0
      %411 = vmatpush1.bf16.msra.mxu0 %v408
      %412 = vmatprep.subr.bf16.mxu0 0
      %413 = vmatpush1.bf16.msra.mxu0 0
      %414 = vmatprep.subr.bf16.mxu0 0
      %415 = vmatpush1.bf16.msra.mxu0 0
      %416 = vmatprep.subr.bf16.mxu0 0
      %417 = vmatpush1.bf16.msra.mxu0 0
      %418 = vmatprep.subr.bf16.mxu0 0
      %419 = vmatpush1.bf16.msra.mxu0 0
      %420 = vmatprep.subr.bf16.mxu0 0
      %421 = vmatpush1.bf16.msra.mxu0 0
      %422 = vmatprep.subr.bf16.mxu0 0
      %423 = vmatpush1.bf16.msra.mxu0 0
      %424 = vmatprep.subr.bf16.mxu0 0
      %425 = vmatpush1.bf16.msra.mxu0 0
      %426 = vmatprep.subr.bf16.mxu0 0
      %427 = vmatpush1.bf16.msra.mxu0 0
      %428 = vmatprep.subr.bf16.mxu0 0
      %429 = vmatpush1.bf16.msra.mxu0 0
      %430 = vmatprep.subr.bf16.mxu0 0
      %431 = vmatpush1.bf16.msra.mxu0 0
      %432 = vmatprep.subr.bf16.mxu0 0
      %433 = vmatpush1.bf16.msra.mxu0 0
      %434 = vmatprep.subr.bf16.mxu0 0
      %435 = vmatpush1.bf16.msra.mxu0 0
      %436 = vmatprep.subr.bf16.mxu0 0
      %437 = vmatpush1.bf16.msra.mxu0 0
      %438 = vmatprep.subr.bf16.mxu0 0
      %439 = vmatpush1.bf16.msra.mxu0 0
      %440 = vmatprep.subr.bf16.mxu0 0
      %441 = vmatpush1.bf16.msra.mxu0 0
      %442 = vmatprep.mubr.bf16.mxu0 0
      %443 = vmatmul.mubr.bf16.gmra.mrb[0].mxu0 %v404
      %v444 = vpop.f32.mrb[0].mxu0
      %v445 = vadd.f32 0.0, %v444
      %v446 = vpop.f32.mrb[0].mxu0
      %v447 = vpop.f32.mrb[0].mxu0
      %v448 = vpop.f32.mrb[0].mxu0
      %449 = vdwg.mxu0
      %v450 = vld [vmem:[#allocation4] sm:$0xff]
      %452 = vset.pattern.permute.xlu0 0
      %453 = vperm.xlu0 %452, %v385
      %v454 = vpop.permute.xlu0 %453
      %v456 = vmul.f32 %v454, %v450
      %v457 = vadd.f32 %v456, %v445
      %458 = vst.msk [vmem:[#allocation4] sm:$0xff] %vm329, %v457
      %459 = vst.msk [vmem:[#allocation2] sm:$0xff] %vm400, %v382
      %v460 = vld [vmem:[%s286] sm:$0xf]
      %v461 = vld [vmem:[%s293] sm:$0xf]
      %v462 = vld [vmem:[%s300] sm:$0xf]
      %v464 = vunpack.c.l.b16 %v460
      %v465 = vpack.c.b16 %v464, %v464
      %466 = vrot.lane.b32.xlu0 %v465, 120
      %v467 = vpop.permute.xlu0 %466
      %v469 = vsel %vm329, %v467, 0
      %v472 = vsel %vm329, %v461, 0
      %474 = vmatprep.subr.bf16.mxu0 0
      %475 = vmatpush1.bf16.xpose.msra.mxu0 %v472
      %476 = vmatprep.subr.bf16.mxu0 0
      %477 = vmatpush1.bf16.xpose.msra.mxu0 0
      %478 = vmatprep.subr.bf16.mxu0 0
      %479 = vmatpush1.bf16.xpose.msra.mxu0 0
      %480 = vmatprep.subr.bf16.mxu0 0
      %481 = vmatpush1.bf16.xpose.msra.mxu0 0
      %482 = vmatprep.subr.bf16.mxu0 0
      %483 = vmatpush1.bf16.xpose.msra.mxu0 0
      %484 = vmatprep.subr.bf16.mxu0 0
      %485 = vmatpush1.bf16.xpose.msra.mxu0 0
      %486 = vmatprep.subr.bf16.mxu0 0
      %487 = vmatpush1.bf16.xpose.msra.mxu0 0
      %488 = vmatprep.subr.bf16.mxu0 0
      %489 = vmatpush1.bf16.xpose.msra.mxu0 0
      %490 = vmatprep.subr.bf16.mxu0 0
      %491 = vmatpush1.bf16.xpose.msra.mxu0 0
      %492 = vmatprep.subr.bf16.mxu0 0
      %493 = vmatpush1.bf16.xpose.msra.mxu0 0
      %494 = vmatprep.subr.bf16.mxu0 0
      %495 = vmatpush1.bf16.xpose.msra.mxu0 0
      %496 = vmatprep.subr.bf16.mxu0 0
      %497 = vmatpush1.bf16.xpose.msra.mxu0 0
      %498 = vmatprep.subr.bf16.mxu0 0
      %499 = vmatpush1.bf16.xpose.msra.mxu0 0
      %500 = vmatprep.subr.bf16.mxu0 0
      %501 = vmatpush1.bf16.xpose.msra.mxu0 0
      %502 = vmatprep.subr.bf16.mxu0 0
      %503 = vmatpush1.bf16.xpose.msra.mxu0 0
      %504 = vmatprep.subr.bf16.mxu0 0
      %505 = vmatpush1.bf16.xpose.msra.mxu0 0
      %506 = vmatprep.mubr.bf16.mxu0 0
      %507 = vmatmul.mubr.bf16.gmra.mrb[0].mxu0 %v469
      %v508 = vpop.f32.mrb[0].mxu0
      %v509 = vadd.f32 0.0, %v508
      %v510 = vpop.f32.mrb[0].mxu0
      %v511 = vpop.f32.mrb[0].mxu0
      %v512 = vpop.f32.mrb[0].mxu0
      %513 = vdwg.mxu0
      %v514 = vmul.f32 %v509, 0.35355338
      %v515 = vadd.f32 %v514, %v325
      %v516 = vld [vmem:[#allocation2] sm:$0xff]
      %v517 = vsel %vm329, %v515, -inf
      %518 = vmax.xlane.f32.xlu0 %v517
      %v519 = vpop.xlane.xlu0 %518
      %v520 = vmax.f32 %v516, %v519
      %v521 = vsub.f32 %v516, %v520
      %v522 = vmul.f32 %v521, 1.442695
      %v523 = vpow.pop %v522
      %525 = vset.pattern.permute.xlu0 1
      %526 = vperm.xlu0 %525, %v520
      %v527 = vpop.permute.xlu0 %526
      %v529 = vsub.f32 %v515, %v527
      %v530 = vmul.f32 %v529, 1.442695
      %v531 = vpow.pop %v530
      %v532 = vld [vmem:[#allocation3] sm:$0xff]
      %v533 = vmul.f32 %v523, %v532
      %v534 = vsel %vm329, %v531, 0.0
      %535 = vadd.xlane.f32.xlu0 %v534
      %v536 = vpop.xlane.xlu0 %535
      %v537 = vadd.f32 %v533, %v536
      %vm538 = vcmask 15368
      %539 = vst.msk [vmem:[#allocation3] sm:$0xff] %vm538, %v537
      %v540 = vpack.c.bf16 %v531, %v531
      %v542 = vsel %vm329, %v540, 0
      %v545 = vsel %vm406, %v462, 0
      %547 = vmatprep.subr.bf16.mxu0 0
      %548 = vmatpush1.bf16.msra.mxu0 %v545
      %549 = vmatprep.subr.bf16.mxu0 0
      %550 = vmatpush1.bf16.msra.mxu0 0
      %551 = vmatprep.subr.bf16.mxu0 0
      %552 = vmatpush1.bf16.msra.mxu0 0
      %553 = vmatprep.subr.bf16.mxu0 0
      %554 = vmatpush1.bf16.msra.mxu0 0
      %555 = vmatprep.subr.bf16.mxu0 0
      %556 = vmatpush1.bf16.msra.mxu0 0
      %557 = vmatprep.subr.bf16.mxu0 0
      %558 = vmatpush1.bf16.msra.mxu0 0
      %559 = vmatprep.subr.bf16.mxu0 0
      %560 = vmatpush1.bf16.msra.mxu0 0
      %561 = vmatprep.subr.bf16.mxu0 0
      %562 = vmatpush1.bf16.msra.mxu0 0
      %563 = vmatprep.subr.bf16.mxu0 0
      %564 = vmatpush1.bf16.msra.mxu0 0
      %565 = vmatprep.subr.bf16.mxu0 0
      %566 = vmatpush1.bf16.msra.mxu0 0
      %567 = vmatprep.subr.bf16.mxu0 0
      %568 = vmatpush1.bf16.msra.mxu0 0
      %569 = vmatprep.subr.bf16.mxu0 0
      %570 = vmatpush1.bf16.msra.mxu0 0
      %571 = vmatprep.subr.bf16.mxu0 0
      %572 = vmatpush1.bf16.msra.mxu0 0
      %573 = vmatprep.subr.bf16.mxu0 0
      %574 = vmatpush1.bf16.msra.mxu0 0
      %575 = vmatprep.subr.bf16.mxu0 0
      %576 = vmatpush1.bf16.msra.mxu0 0
      %577 = vmatprep.subr.bf16.mxu0 0
      %578 = vmatpush1.bf16.msra.mxu0 0
      %579 = vmatprep.mubr.bf16.mxu0 0
      %580 = vmatmul.mubr.bf16.gmra.mrb[0].mxu0 %v542
      %v581 = vpop.f32.mrb[0].mxu0
      %v582 = vadd.f32 0.0, %v581
      %v583 = vpop.f32.mrb[0].mxu0
      %v584 = vpop.f32.mrb[0].mxu0
      %v585 = vpop.f32.mrb[0].mxu0
      %586 = vdwg.mxu0
      %v587 = vld [vmem:[#allocation4] sm:$0xff]
      %589 = vset.pattern.permute.xlu0 1
      %590 = vperm.xlu0 %589, %v523
      %v591 = vpop.permute.xlu0 %590
      %v593 = vmul.f32 %v591, %v587
      %595 = vrot.lane.b32.xlu0 %v582, 8
      %v596 = vpop.permute.xlu0 %595
      %v598 = vadd.f32 %v593, %v596
      %vm599 = vcmask 130112
      %600 = vst.msk [vmem:[#allocation4] sm:$0xff] %vm599, %v598
      %601 = vst.msk [vmem:[#allocation2] sm:$0xff] %vm538, %v520
      %v602 = vld [vmem:[%s286] sm:$0xf]
      %v603 = vld [vmem:[%s293] sm:$0xf]
      %v604 = vld [vmem:[%s300] sm:$0xf]
      %v606 = vunpack.c.l.b16 %v602
      %v607 = vpack.c.b16 %v606, %v606
      %608 = vrot.lane.b32.xlu0 %v607, 112
      %v609 = vpop.permute.xlu0 %608
      %v611 = vunpack.c.l.b16 %v603
      %v612 = vpack.c.b16 %v611, %v611
      %613 = vrot.lane.b32.xlu0 %v612, 120
      %v614 = vpop.permute.xlu0 %613
      %v616 = vsel %vm329, %v609, 0
      %v619 = vsel %vm329, %v614, 0
      %621 = vmatprep.subr.bf16.mxu0 0
      %622 = vmatpush1.bf16.xpose.msra.mxu0 %v619
      %623 = vmatprep.subr.bf16.mxu0 0
      %624 = vmatpush1.bf16.xpose.msra.mxu0 0
      %625 = vmatprep.subr.bf16.mxu0 0
      %626 = vmatpush1.bf16.xpose.msra.mxu0 0
      %627 = vmatprep.subr.bf16.mxu0 0
      %628 = vmatpush1.bf16.xpose.msra.mxu0 0
      %629 = vmatprep.subr.bf16.mxu0 0
      %630 = vmatpush1.bf16.xpose.msra.mxu0 0
      %631 = vmatprep.subr.bf16.mxu0 0
      %632 = vmatpush1.bf16.xpose.msra.mxu0 0
      %633 = vmatprep.subr.bf16.mxu0 0
      %634 = vmatpush1.bf16.xpose.msra.mxu0 0
      %635 = vmatprep.subr.bf16.mxu0 0
      %636 = vmatpush1.bf16.xpose.msra.mxu0 0
      %637 = vmatprep.subr.bf16.mxu0 0
      %638 = vmatpush1.bf16.xpose.msra.mxu0 0
      %639 = vmatprep.subr.bf16.mxu0 0
      %640 = vmatpush1.bf16.xpose.msra.mxu0 0
      %641 = vmatprep.subr.bf16.mxu0 0
      %642 = vmatpush1.bf16.xpose.msra.mxu0 0
      %643 = vmatprep.subr.bf16.mxu0 0
      %644 = vmatpush1.bf16.xpose.msra.mxu0 0
      %645 = vmatprep.subr.bf16.mxu0 0
      %646 = vmatpush1.bf16.xpose.msra.mxu0 0
      %647 = vmatprep.subr.bf16.mxu0 0
      %648 = vmatpush1.bf16.xpose.msra.mxu0 0
      %649 = vmatprep.subr.bf16.mxu0 0
      %650 = vmatpush1.bf16.xpose.msra.mxu0 0
      %651 = vmatprep.subr.bf16.mxu0 0
      %652 = vmatpush1.bf16.xpose.msra.mxu0 0
      %653 = vmatprep.mubr.bf16.mxu0 0
      %654 = vmatmul.mubr.bf16.gmra.mrb[0].mxu0 %v616
      %v655 = vpop.f32.mrb[0].mxu0
      %v656 = vadd.f32 0.0, %v655
      %v657 = vpop.f32.mrb[0].mxu0
      %v658 = vpop.f32.mrb[0].mxu0
      %v659 = vpop.f32.mrb[0].mxu0
      %660 = vdwg.mxu0
      %v661 = vmul.f32 %v656, 0.35355338
      %v662 = vadd.f32 %v661, %v325
      %v663 = vld [vmem:[#allocation2] sm:$0xff]
      %v664 = vsel %vm329, %v662, -inf
      %665 = vmax.xlane.f32.xlu0 %v664
      %v666 = vpop.xlane.xlu0 %665
      %v667 = vmax.f32 %v663, %v666
      %v668 = vsub.f32 %v663, %v667
      %v669 = vmul.f32 %v668, 1.442695
      %v670 = vpow.pop %v669
      %672 = vset.pattern.permute.xlu0 2
      %673 = vperm.xlu0 %672, %v667
      %v674 = vpop.permute.xlu0 %673
      %v676 = vsub.f32 %v662, %v674
      %v677 = vmul.f32 %v676, 1.442695
      %v678 = vpow.pop %v677
      %v679 = vld [vmem:[#allocation3] sm:$0xff]
      %v680 = vmul.f32 %v670, %v679
      %v681 = vsel %vm329, %v678, 0.0
      %682 = vadd.xlane.f32.xlu0 %v681
      %v683 = vpop.xlane.xlu0 %682
      %v684 = vadd.f32 %v680, %v683
      %vm685 = vcmask 23568
      %686 = vst.msk [vmem:[#allocation3] sm:$0xff] %vm685, %v684
      %v687 = vpack.c.bf16 %v678, %v678
      %v689 = vunpack.c.l.b16 %v604
      %v690 = vpack.c.b16 %v689, %v689
      %691 = vrot.lane.b32.xlu0 %v690, 120
      %v692 = vpop.permute.xlu0 %691
      %v694 = vsel %vm329, %v687, 0
      %v697 = vsel %vm406, %v692, 0
      %699 = vmatprep.subr.bf16.mxu0 0
      %700 = vmatpush1.bf16.msra.mxu0 %v697
      %701 = vmatprep.subr.bf16.mxu0 0
      %702 = vmatpush1.bf16.msra.mxu0 0
      %703 = vmatprep.subr.bf16.mxu0 0
      %704 = vmatpush1.bf16.msra.mxu0 0
      %705 = vmatprep.subr.bf16.mxu0 0
      %706 = vmatpush1.bf16.msra.mxu0 0
      %707 = vmatprep.subr.bf16.mxu0 0
      %708 = vmatpush1.bf16.msra.mxu0 0
      %709 = vmatprep.subr.bf16.mxu0 0
      %710 = vmatpush1.bf16.msra.mxu0 0
      %711 = vmatprep.subr.bf16.mxu0 0
      %712 = vmatpush1.bf16.msra.mxu0 0
      %713 = vmatprep.subr.bf16.mxu0 0
      %714 = vmatpush1.bf16.msra.mxu0 0
      %715 = vmatprep.subr.bf16.mxu0 0
      %716 = vmatpush1.bf16.msra.mxu0 0
      %717 = vmatprep.subr.bf16.mxu0 0
      %718 = vmatpush1.bf16.msra.mxu0 0
      %719 = vmatprep.subr.bf16.mxu0 0
      %720 = vmatpush1.bf16.msra.mxu0 0
      %721 = vmatprep.subr.bf16.mxu0 0
      %722 = vmatpush1.bf16.msra.mxu0 0
      %723 = vmatprep.subr.bf16.mxu0 0
      %724 = vmatpush1.bf16.msra.mxu0 0
      %725 = vmatprep.subr.bf16.mxu0 0
      %726 = vmatpush1.bf16.msra.mxu0 0
      %727 = vmatprep.subr.bf16.mxu0 0
      %728 = vmatpush1.bf16.msra.mxu0 0
      %729 = vmatprep.subr.bf16.mxu0 0
      %730 = vmatpush1.bf16.msra.mxu0 0
      %731 = vmatprep.mubr.bf16.mxu0 0
      %732 = vmatmul.mubr.bf16.gmra.mrb[0].mxu0 %v694
      %v733 = vpop.f32.mrb[0].mxu0
      %v734 = vadd.f32 0.0, %v733
      %v735 = vpop.f32.mrb[0].mxu0
      %v736 = vpop.f32.mrb[0].mxu0
      %v737 = vpop.f32.mrb[0].mxu0
      %738 = vdwg.mxu0
      %v739 = vld [vmem:[#allocation4] sm:$0xff]
      %741 = vset.pattern.permute.xlu0 2
      %742 = vperm.xlu0 %741, %v670
      %v743 = vpop.permute.xlu0 %742
      %v745 = vmul.f32 %v743, %v739
      %747 = vrot.lane.b32.xlu0 %v734, 16
      %v748 = vpop.permute.xlu0 %747
      %v750 = vadd.f32 %v745, %v748
      %vm751 = vcmask 195712
      %752 = vst.msk [vmem:[#allocation4] sm:$0xff] %vm751, %v750
      %753 = vst.msk [vmem:[#allocation2] sm:$0xff] %vm685, %v667
      %v754 = vld [vmem:[%s286] sm:$0xf]
      %v755 = vld [vmem:[%s293] sm:$0xf]
      %v756 = vld [vmem:[%s300] sm:$0xf]
      %v758 = vunpack.c.l.b16 %v754
      %v759 = vpack.c.b16 %v758, %v758
      %760 = vrot.lane.b32.xlu0 %v759, 104
      %v761 = vpop.permute.xlu0 %760
      %v763 = vunpack.c.l.b16 %v755
      %v764 = vpack.c.b16 %v763, %v763
      %765 = vrot.lane.b32.xlu0 %v764, 120
      %v766 = vpop.permute.xlu0 %765
      %v768 = vsel %vm329, %v761, 0
      %v771 = vsel %vm329, %v766, 0
      %773 = vmatprep.subr.bf16.mxu0 0
      %774 = vmatpush1.bf16.xpose.msra.mxu0 %v771
      %775 = vmatprep.subr.bf16.mxu0 0
      %776 = vmatpush1.bf16.xpose.msra.mxu0 0
      %777 = vmatprep.subr.bf16.mxu0 0
      %778 = vmatpush1.bf16.xpose.msra.mxu0 0
      %779 = vmatprep.subr.bf16.mxu0 0
      %780 = vmatpush1.bf16.xpose.msra.mxu0 0
      %781 = vmatprep.subr.bf16.mxu0 0
      %782 = vmatpush1.bf16.xpose.msra.mxu0 0
      %783 = vmatprep.subr.bf16.mxu0 0
      %784 = vmatpush1.bf16.xpose.msra.mxu0 0
      %785 = vmatprep.subr.bf16.mxu0 0
      %786 = vmatpush1.bf16.xpose.msra.mxu0 0
      %787 = vmatprep.subr.bf16.mxu0 0
      %788 = vmatpush1.bf16.xpose.msra.mxu0 0
      %789 = vmatprep.subr.bf16.mxu0 0
      %790 = vmatpush1.bf16.xpose.msra.mxu0 0
      %791 = vmatprep.subr.bf16.mxu0 0
      %792 = vmatpush1.bf16.xpose.msra.mxu0 0
      %793 = vmatprep.subr.bf16.mxu0 0
      %794 = vmatpush1.bf16.xpose.msra.mxu0 0
      %795 = vmatprep.subr.bf16.mxu0 0
      %796 = vmatpush1.bf16.xpose.msra.mxu0 0
      %797 = vmatprep.subr.bf16.mxu0 0
      %798 = vmatpush1.bf16.xpose.msra.mxu0 0
      %799 = vmatprep.subr.bf16.mxu0 0
      %800 = vmatpush1.bf16.xpose.msra.mxu0 0
      %801 = vmatprep.subr.bf16.mxu0 0
      %802 = vmatpush1.bf16.xpose.msra.mxu0 0
      %803 = vmatprep.subr.bf16.mxu0 0
      %804 = vmatpush1.bf16.xpose.msra.mxu0 0
      %805 = vmatprep.mubr.bf16.mxu0 0
      %806 = vmatmul.mubr.bf16.gmra.mrb[0].mxu0 %v768
      %v807 = vpop.f32.mrb[0].mxu0
      %v808 = vadd.f32 0.0, %v807
      %v809 = vpop.f32.mrb[0].mxu0
      %v810 = vpop.f32.mrb[0].mxu0
      %v811 = vpop.f32.mrb[0].mxu0
      %812 = vdwg.mxu0
      %v813 = vmul.f32 %v808, 0.35355338
      %v814 = vadd.f32 %v813, %v325
      %v815 = vld [vmem:[#allocation2] sm:$0xff]
      %v816 = vsel %vm329, %v814, -inf
      %817 = vmax.xlane.f32.xlu0 %v816
      %v818 = vpop.xlane.xlu0 %817
      %v819 = vmax.f32 %v815, %v818
      %v820 = vsub.f32 %v815, %v819
      %v821 = vmul.f32 %v820, 1.442695
      %v822 = vpow.pop %v821
      %824 = vset.pattern.permute.xlu0 3
      %825 = vperm.xlu0 %824, %v819
      %v826 = vpop.permute.xlu0 %825
      %v828 = vsub.f32 %v814, %v826
      %v829 = vmul.f32 %v828, 1.442695
      %v830 = vpow.pop %v829
      %v831 = vld [vmem:[#allocation3] sm:$0xff]
      %v832 = vmul.f32 %v822, %v831
      %v833 = vsel %vm329, %v830, 0.0
      %834 = vadd.xlane.f32.xlu0 %v833
      %v835 = vpop.xlane.xlu0 %834
      %v836 = vadd.f32 %v832, %v835
      %vm837 = vcmask 31768
      %838 = vst.msk [vmem:[#allocation3] sm:$0xff] %vm837, %v836
      %v839 = vpack.c.bf16 %v830, %v830
      %v841 = vunpack.c.l.b16 %v756
      %v842 = vpack.c.b16 %v841, %v841
      %843 = vrot.lane.b32.xlu0 %v842, 120
      %v844 = vpop.permute.xlu0 %843
      %v846 = vsel %vm329, %v839, 0
      %v849 = vsel %vm406, %v844, 0
      %851 = vmatprep.subr.bf16.mxu0 0
      %852 = vmatpush1.bf16.msra.mxu0 %v849
      %853 = vmatprep.subr.bf16.mxu0 0
      %854 = vmatpush1.bf16.msra.mxu0 0
      %855 = vmatprep.subr.bf16.mxu0 0
      %856 = vmatpush1.bf16.msra.mxu0 0
      %857 = vmatprep.subr.bf16.mxu0 0
      %858 = vmatpush1.bf16.msra.mxu0 0
      %859 = vmatprep.subr.bf16.mxu0 0
      %860 = vmatpush1.bf16.msra.mxu0 0
      %861 = vmatprep.subr.bf16.mxu0 0
      %862 = vmatpush1.bf16.msra.mxu0 0
      %863 = vmatprep.subr.bf16.mxu0 0
      %864 = vmatpush1.bf16.msra.mxu0 0
      %865 = vmatprep.subr.bf16.mxu0 0
      %866 = vmatpush1.bf16.msra.mxu0 0
      %867 = vmatprep.subr.bf16.mxu0 0
      %868 = vmatpush1.bf16.msra.mxu0 0
      %869 = vmatprep.subr.bf16.mxu0 0
      %870 = vmatpush1.bf16.msra.mxu0 0
      %871 = vmatprep.subr.bf16.mxu0 0
      %872 = vmatpush1.bf16.msra.mxu0 0
      %873 = vmatprep.subr.bf16.mxu0 0
      %874 = vmatpush1.bf16.msra.mxu0 0
      %875 = vmatprep.subr.bf16.mxu0 0
      %876 = vmatpush1.bf16.msra.mxu0 0
      %877 = vmatprep.subr.bf16.mxu0 0
      %878 = vmatpush1.bf16.msra.mxu0 0
      %879 = vmatprep.subr.bf16.mxu0 0
      %880 = vmatpush1.bf16.msra.mxu0 0
      %881 = vmatprep.subr.bf16.mxu0 0
      %882 = vmatpush1.bf16.msra.mxu0 0
      %883 = vmatprep.mubr.bf16.mxu0 0
      %884 = vmatmul.mubr.bf16.gmra.mrb[0].mxu0 %v846
      %v885 = vpop.f32.mrb[0].mxu0
      %v886 = vadd.f32 0.0, %v885
      %v887 = vpop.f32.mrb[0].mxu0
      %v888 = vpop.f32.mrb[0].mxu0
      %v889 = vpop.f32.mrb[0].mxu0
      %890 = vdwg.mxu0
      %v891 = vld [vmem:[#allocation4] sm:$0xff]
      %893 = vset.pattern.permute.xlu0 3
      %894 = vperm.xlu0 %893, %v822
      %v895 = vpop.permute.xlu0 %894
      %v897 = vmul.f32 %v895, %v891
      %899 = vrot.lane.b32.xlu0 %v886, 24
      %v900 = vpop.permute.xlu0 %899
      %v902 = vadd.f32 %v897, %v900
      %vm903 = vcmask 261312
      %904 = vst.msk [vmem:[#allocation4] sm:$0xff] %vm903, %v902
      %905 = vst.msk [vmem:[#allocation2] sm:$0xff] %vm837, %v819
      // Predicated region
      $region41: #{transformer_forward.10} parent=35 // pred_check
        %p906 = pneg %p316
      $region42: #{transformer_forward.10} parent=35 // pred_check_branch
        %908 = sbr.rel (%p906) target = $region44
      $region43: #{transformer_forward.10} parent=35 // pred_region
        %v909 = vld [vmem:[#allocation3] sm:$0xff]
        %v910 = vrcp.pop %v909
        %v911 = vmul.f32 1.0, %v910
        %v912 = vld [vmem:[#allocation4] sm:$0xff]
        %914 = vset.pattern.permute.xlu0 0
        %915 = vperm.xlu0 %914, %v911
        %v916 = vpop.permute.xlu0 %915
        %v918 = vmul.f32 %v912, %v916
        %v919 = vpack.c.bf16 %v918, %v918
        %vm920 = vcmask 60416
        %921 = vst.msk [vmem:[%s314] sm:$0xf] %vm920, %v919
        %v922 = vld [vmem:[#allocation3] sm:$0xff]
        %v923 = vrcp.pop %v922
        %v924 = vmul.f32 1.0, %v923
        %v925 = vld [vmem:[#allocation4] sm:$0xff]
        %927 = vset.pattern.permute.xlu0 1
        %928 = vperm.xlu0 %927, %v924
        %v929 = vpop.permute.xlu0 %928
        %v931 = vmul.f32 %v925, %v929
        %v932 = vpack.c.bf16 %v931, %v931
        %vm933 = vcmask 126016
        %934 = vst.msk [vmem:[%s314] sm:$0xf] %vm933, %v932
        %v935 = vld [vmem:[#allocation3] sm:$0xff]
        %v936 = vrcp.pop %v935
        %v937 = vmul.f32 1.0, %v936
        %v938 = vld [vmem:[#allocation4] sm:$0xff]
        %940 = vset.pattern.permute.xlu0 2
        %941 = vperm.xlu0 %940, %v937
        %v942 = vpop.permute.xlu0 %941
        %v944 = vmul.f32 %v938, %v942
        %v945 = vpack.c.bf16 %v944, %v944
        %vm946 = vcmask 191616
        %947 = vst.msk [vmem:[%s314] sm:$0xf] %vm946, %v945
        %v948 = vld [vmem:[#allocation3] sm:$0xff]
        %v949 = vrcp.pop %v948
        %v950 = vmul.f32 1.0, %v949
        %v951 = vld [vmem:[#allocation4] sm:$0xff]
        %953 = vset.pattern.permute.xlu0 3
        %954 = vperm.xlu0 %953, %v950
        %v955 = vpop.permute.xlu0 %954
        %v957 = vmul.f32 %v951, %v955
        %v958 = vpack.c.bf16 %v957, %v957
        %vm959 = vcmask 257216
        %960 = vst.msk [vmem:[%s314] sm:$0xf] %vm959, %v958
      $region44: #{transformer_forward.10} parent=35 // pred_fallthru
        _
      %p961 = scmp.lt.s32.totalorder %s20, 1
      %s962 = scalar_select %p961, %s20, 1
      %p963 = scmp.lt.s32.totalorder %s21, 0
      %s964 = scalar_select %p963, %s21, 0
      %s965 = sadd.s32 %s964, %s962
      %s966 = smul.addr %s965, 4
      %s967 = scalar_lea.vmem %s4, %s966
      // Predicated region
      $region45: #{transformer_forward.10} parent=35 // pred_check
        %p968 = pneg %p166
      $region46: #{transformer_forward.10} parent=35 // pred_check_branch
        %970 = sbr.rel (%p968) target = $region48
      $region47: #{transformer_forward.10} parent=35 // pred_region
        _
      $region48: #{transformer_forward.10} parent=35 // pred_fallthru
        _
    $region36: #{transformer_forward.10} parent=5 // pred_fallthru
      _
    %p971 = scmp.le.s32.totalorder 2, %s10
    // Predicated region
    $region49: #{transformer_forward.10} parent=5 // pred_check
      %p972 = pneg %p971
    $region50: #{transformer_forward.10} parent=5 // pred_check_branch
      %974 = sbr.rel (%p972) target = $region52
    $region51: #{transformer_forward.10} parent=5 // pred_region
      %s975 = ssub.s32 %s10, 2
      // Predicated region
      $region53: #{transformer_forward.10} parent=51 // pred_check
        %p976 = pneg %p172
      $region54: #{transformer_forward.10} parent=51 // pred_check_branch
        %978 = sbr.rel (%p976) target = $region56
      $region55: #{transformer_forward.10} parent=51 // pred_region
        %p979 = scmp.lt.s32.totalorder %s23, 1
        %s980 = scalar_select %p979, %s23, 1
        %p981 = scmp.lt.s32.totalorder %s24, 0
        %s982 = scalar_select %p981, %s24, 0
        %s983 = sadd.s32 %s982, %s980
        %s984 = smul.addr %s983, 4
        %s985 = scalar_lea.vmem %s4, %s984
      $region56: #{transformer_forward.10} parent=51 // pred_fallthru
        _
    $region52: #{transformer_forward.10} parent=5 // pred_fallthru
      _
  $region6: #{transformer_forward.10} parent=0 // loop_footer
    %s14 = sadd.s32 1, %s10
  $region7: #{transformer_forward.10} parent=0 // loop_footer_branch
    %9 = sbr.rel target = $region3
  $region8: #{transformer_forward.10} parent=0 // loop_exit
    _

// kernel: transformer_forward.17
$region0: #{transformer_forward.17}
  #allocation0 [shape = 'u32[]', space=smem, size = 0x4, offset = 0x4, fixed_abs, tag = 'smem constant byte address 0x4 - core index']
  #allocation1 [shape = 'u32[144,128]{1,0:T(1,128)}', space=vmem, size = 0x12000, scoped, tag = 'internal scratch']
  #allocation2 [shape = 'bf16[16,32]{1,0:T(16,128)(2,1)}', space=vmem, size = 0x1000, scoped, tag = 'scratch operand']
  %s0 = inlined_call_operand.vmem [shape: bf16[16,32], index: 0, kind: input, shape index: {}]
  %s1 = inlined_call_operand.vmem [shape: f32[1,32], index: 1, kind: input, shape index: {}]
  %s2 = inlined_call_operand.vmem [shape: bf16[32,64], index: 2, kind: input, shape index: {}]
  %s3 = inlined_call_operand.hbm [shape: f32[16,64], index: 3, kind: output, shape index: {}]
  %s4 = sld [smem:[#allocation0]]
  $region26: #{transformer_forward.17} parent=0
    _
  %s6 = ssub.s32 1, %s4
  %s7 = scalar_select 0, %s6, %s4
  $region1: #{transformer_forward.17} parent=0
    #allocation3 [shape = 'u8[8192]{0}', space=vmem, size = 0x2000, scoped, tag = 'output window, operand 0, single buffered']
    #allocation4 [shape = 's32[1]{0}', space=sflag, size = 0x4, scoped, tag = 'scoped memory for transformer_forward.17']
    %8 = vsyncpa [#allocation4], 0
    // Predicated region
    $region2: #{transformer_forward.17} parent=1 // pred_check
      _
    $region3: #{transformer_forward.17} parent=1 // pred_check_branch
      %10 = sbr.rel (0) target = $region5
    $region4: #{transformer_forward.17} parent=1 // pred_region
      _
    $region5: #{transformer_forward.17} parent=1 // pred_fallthru
      _
    // Predicated region
    $region6: #{transformer_forward.17} parent=1 // pred_check
      _
    $region7: #{transformer_forward.17} parent=1 // pred_check_branch
      %12 = sbr.rel (0) target = $region9
    $region8: #{transformer_forward.17} parent=1 // pred_region
      _
    $region9: #{transformer_forward.17} parent=1 // pred_fallthru
      _
    // Predicated region
    $region10: #{transformer_forward.17} parent=1 // pred_check
      _
    $region11: #{transformer_forward.17} parent=1 // pred_check_branch
      %14 = sbr.rel (0) target = $region13
    $region12: #{transformer_forward.17} parent=1 // pred_region
      _
    $region13: #{transformer_forward.17} parent=1 // pred_fallthru
      _
    %p16 = scmp.eq.s32.totalorder 0, 0
    // Predicated region
    $region14: #{transformer_forward.17} parent=1 // pred_check
      %p17 = pneg %p16
    $region15: #{transformer_forward.17} parent=1 // pred_check_branch
      %19 = sbr.rel (%p17) target = $region17
    $region16: #{transformer_forward.17} parent=1 // pred_region
      %v20 = vld [vmem:[%s0] sm:$0xf]
      %v21 = vld [vmem:[%s0 + $0x4] sm:$0xf]
      %v22 = vunpack.c.l.bf16 %v20
      %v23 = vunpack.c.l.bf16 %v21
      %v24 = vmul.f32 %v22, %v22
      %v25 = vmul.f32 %v23, %v23
      %vm26 = vcmask 261120
      %v27 = vsel %vm26, %v24, 0.0
      %28 = vadd.xlane.f32.xlu0 %v27
      %v29 = vpop.xlane.xlu0 %28
      %v30 = vsel %vm26, %v25, 0.0
      %31 = vadd.xlane.f32.xlu0 %v30
      %v32 = vpop.xlane.xlu0 %31
      %v33 = vrcp.pop 32.0
      %v34 = vmul.f32 %v29, %v33
      %v35 = vmul.f32 %v32, %v33
      %v36 = vadd.f32 %v34, 1e-05
      %v37 = vadd.f32 %v35, 1e-05
      %v38 = vrsqrt.pop %v36
      %v39 = vrsqrt.pop %v37
      %v40 = vmul.f32 %v22, %v38
      %v41 = vmul.f32 %v23, %v39
      %v42 = vld [vmem:[%s1] sm:$0x1]
      %v44 = vlaneseq
      %v45 = vshrl.u32 %v44, 7
      %v46 = vsub.s32 0, %v45
      %v47 = vrot.slane %v42, %v46
      %v49 = vmul.f32 %v40, %v47
      %v50 = vmul.f32 %v41, %v47
      %v51 = vpack.c.bf16 %v50, %v49
      %52 = vst.msk [vmem:[#allocation2] sm:$0xff] %vm26, %v51
    $region17: #{transformer_forward.17} parent=1 // pred_fallthru
      _
    %v53 = vld [vmem:[#allocation2] sm:$0xff]
    %v54 = vld [vmem:[%s2] sm:$0xf]
    %v55 = vld [vmem:[%s2 + $0x4] sm:$0xf]
    %v56 = vld [vmem:[%s2 + $0x8] sm:$0xf]
    %v57 = vld [vmem:[%s2 + $0xc] sm:$0xf]
    %v62 = vunpack.c.l.b16 %v54
    %v63 = vunpack.c.l.b16 %v55
    %v64 = vunpack.c.l.b16 %v56
    %v65 = vunpack.c.l.b16 %v57
    %v66 = vpack.c.b16 %v63, %v62
    %v67 = vpack.c.b16 %v65, %v64
    %vm70 = vcmask 261120
    %v72 = vsel %vm70, %v53, 0
    %74 = vmatprep.subr.bf16.mxu0 0
    %75 = vmatpush1.bf16.msra.mxu0 %v66
    %76 = vmatprep.subr.bf16.mxu0 0
    %77 = vmatpush1.bf16.msra.mxu0 %v67
    %78 = vmatprep.subr.bf16.mxu0 0
    %79 = vmatpush1.bf16.msra.mxu0 0
    %80 = vmatprep.subr.bf16.mxu0 0
    %81 = vmatpush1.bf16.msra.mxu0 0
    %82 = vmatprep.subr.bf16.mxu0 0
    %83 = vmatpush1.bf16.msra.mxu0 0
    %84 = vmatprep.subr.bf16.mxu0 0
    %85 = vmatpush1.bf16.msra.mxu0 0
    %86 = vmatprep.subr.bf16.mxu0 0
    %87 = vmatpush1.bf16.msra.mxu0 0
    %88 = vmatprep.subr.bf16.mxu0 0
    %89 = vmatpush1.bf16.msra.mxu0 0
    %90 = vmatprep.subr.bf16.mxu0 0
    %91 = vmatpush1.bf16.msra.mxu0 0
    %92 = vmatprep.subr.bf16.mxu0 0
    %93 = vmatpush1.bf16.msra.mxu0 0
    %94 = vmatprep.subr.bf16.mxu0 0
    %95 = vmatpush1.bf16.msra.mxu0 0
    %96 = vmatprep.subr.bf16.mxu0 0
    %97 = vmatpush1.bf16.msra.mxu0 0
    %98 = vmatprep.subr.bf16.mxu0 0
    %99 = vmatpush1.bf16.msra.mxu0 0
    %100 = vmatprep.subr.bf16.mxu0 0
    %101 = vmatpush1.bf16.msra.mxu0 0
    %102 = vmatprep.subr.bf16.mxu0 0
    %103 = vmatpush1.bf16.msra.mxu0 0
    %104 = vmatprep.subr.bf16.mxu0 0
    %105 = vmatpush1.bf16.msra.mxu0 0
    %106 = vmatprep.mubr.bf16.mxu0 0
    %107 = vmatmul.mubr.bf16.gmra.mrb[0].mxu0 %v72
    %v108 = vpop.f32.mrb[0].mxu0
    %v109 = vadd.f32 0.0, %v108
    %v110 = vpop.f32.mrb[0].mxu0
    %v111 = vpop.f32.mrb[0].mxu0
    %v112 = vadd.f32 0.0, %v111
    %v113 = vpop.f32.mrb[0].mxu0
    %114 = vdwg.mxu0
    %vm115 = vcmask 523264
    %116 = vst.msk [vmem:[#allocation3] sm:$0xff] %vm115, %v109
    %117 = vst.msk [vmem:[#allocation3 + $0x8] sm:$0xff] %vm115, %v112
    // Predicated region
    $region18: #{transformer_forward.17} parent=1 // pred_check
      _
    $region19: #{transformer_forward.17} parent=1 // pred_check_branch
      %119 = sbr.rel (0) target = $region21
    $region20: #{transformer_forward.17} parent=1 // pred_region
      %s121 = ssub.s32 256, 256
      %122 = vsyncadd [#allocation4], %s121
      %s123 = sshll.u32 [#allocation3], 4
      %s124 = int_to_ptr.vmem [resolvable:$true] %s123
      %129 = dma.vmem_to_hbm [thread:$0]  %s124, 256, %s3, [#allocation4], 128, 128, 8
    $region21: #{transformer_forward.17} parent=1 // pred_fallthru
      _
    // Predicated region
    $region22: #{transformer_forward.17} parent=1 // pred_check
      _
    $region23: #{transformer_forward.17} parent=1 // pred_check_branch
      %131 = sbr.rel (0) target = $region25
    $region24: #{transformer_forward.17} parent=1 // pred_region
      %132 = dma.done [#allocation4], 256
    $region25: #{transformer_forward.17} parent=1 // pred_fallthru
      _
    %133 = vsyncpa [#allocation4], 1

</llo_original>
